<compile_context>
chip_gen: v5e
topology: v5e:2x2
jax: 0.10.0
libtpu: 0.0.40
codegen_flags: <defaults>
</compile_context>

<pallas_src>
import math

import jax
import jax.numpy as jnp
from jax.experimental import pallas as pl
from jax.experimental.pallas import tpu as pltpu

# ---- Small, module-consistent configuration -------------------------------
VOCAB_SIZE = 32
EMBED_SIZE = 32
HIDDEN_DIM = 32
PROJ_DIM = 32                      # MHA embed_dim == encoder feature dim
NUM_HEADS = 4
HEAD_DIM = PROJ_DIM // NUM_HEADS
PAD_ID, SOS_ID, EOS_ID = 0, 1, 2
BATCH = 2
DEC_LEN = 8                        # decoder length after prepending <sos>
ENC_LEN = 16                       # encoder sequence length


# ---------------------------------------------------------------------------
# Fused kernel: embedding -> LSTM -> (proj∘Q) attention -> (out_proj∘generator)
# ---------------------------------------------------------------------------
def _speller_kernel(tok_ref, w_eih_ref, w_hh_ref, b_lstm_ref,
                    enc_ref, w_pq_ref, b_pq_ref, w_kv_ref, b_kv_ref,
                    w_og_ref, b_og_ref,
                    logp_ref, prob_ref):
    B, L, S = BATCH, DEC_LEN, ENC_LEN
    H, D, V = HIDDEN_DIM, PROJ_DIM, VOCAB_SIZE
    NH, HD = NUM_HEADS, HEAD_DIM

    # ---- fused embedding gather + LSTM input projection (one MXU matmul) ----
    # tok_ref is [L*B, 1] int32 in time-major row order (row = t*B + b).
    col = jax.lax.broadcasted_iota(jnp.int32, (L * B, V), 1)
    onehot = (tok_ref[...] == col).astype(jnp.float32)                    # [L*B, V]
    gx = jnp.dot(onehot, w_eih_ref[...],
                 preferred_element_type=jnp.float32) + b_lstm_ref[...]    # [L*B, 4H]

    # ---- LSTM recurrence, fully unrolled over L (static slices everywhere) ----
    # gate column order is (i, f, o, g): one sigmoid over 3H lanes, one tanh over H.
    w_hh = w_hh_ref[...]
    h = jnp.zeros((B, H), jnp.float32)
    c = jnp.zeros((B, H), jnp.float32)
    hs = []
    for t in range(L):
        gates = gx[t * B:(t + 1) * B, :] + jnp.dot(
            h, w_hh, preferred_element_type=jnp.float32)                  # [B, 4H]
        sig = jax.nn.sigmoid(gates[:, :3 * H])                            # [B, 3H]  (i|f|o)
        g = jnp.tanh(gates[:, 3 * H:])                                    # [B, H]
        c = sig[:, H:2 * H] * c + sig[:, :H] * g
        h = sig[:, 2 * H:] * jnp.tanh(c)
        hs.append(h)

    # batch-major decoder activations [B*L, H]  (row = b*L + t), kept in registers
    dec = jnp.concatenate(
        [jnp.concatenate([hs[t][b:b + 1, :] for t in range(L)], axis=0)
         for b in range(B)], axis=0)

    # ---- attention: proj folded into Q, K|V fused, heads via batched einsums ----
    q = jnp.dot(dec, w_pq_ref[...],
                preferred_element_type=jnp.float32) + b_pq_ref[...]       # [B*L, D]
    enc2 = enc_ref[...].reshape(B * S, D)                                 # [B*S, D]
    kv = jnp.dot(enc2, w_kv_ref[...],
                 preferred_element_type=jnp.float32) + b_kv_ref[...]      # [B*S, 2D]

    scale = 1.0 / math.sqrt(HD)
    ctx_parts = []
    for hd_i in range(NH):                                                # static, 4 heads
        lo, hi = hd_i * HD, (hd_i + 1) * HD
        qh = (q[:, lo:hi] * scale).reshape(B, L, HD)                      # [B, L, hd]
        kh = kv[:, lo:hi].reshape(B, S, HD)                               # [B, S, hd]
        vh = kv[:, D + lo:D + hi].reshape(B, S, HD)                       # [B, S, hd]
        s = jnp.einsum('bld,bsd->bls', qh, kh,
                       preferred_element_type=jnp.float32)                # [B, L, S]
        s = s - jnp.max(s, axis=-1, keepdims=True)
        e = jnp.exp(s)
        attn = e / jnp.sum(e, axis=-1, keepdims=True)
        ctx_h = jnp.einsum('bls,bsd->bld', attn, vh,
                           preferred_element_type=jnp.float32)            # [B, L, hd]
        ctx_parts.append(ctx_h.reshape(B * L, HD))
    ctx = jnp.concatenate(ctx_parts, axis=-1)                             # [B*L, D]

    # ---- out_proj folded into generator, then stable softmax / log_softmax ----
    logits = jnp.dot(ctx, w_og_ref[...],
                     preferred_element_type=jnp.float32) + b_og_ref[...]  # [B*L, V]
    m = jnp.max(logits, axis=-1, keepdims=True)
    ex = jnp.exp(logits - m)
    denom = jnp.sum(ex, axis=-1, keepdims=True)
    logp = (logits - m) - jnp.log(denom)
    prob = ex / denom

    # ---- lane-dense [B, L*V] outputs (256 lanes, unmasked stores) ----
    def lane_dense(x):                                                    # [B*L, V] -> [B, L*V]
        rows = []
        for b in range(B):
            rows.append(jnp.concatenate(
                [x[b * L + t:b * L + t + 1, :] for t in range(L)], axis=1))
        return jnp.concatenate(rows, axis=0)

    logp_ref[...] = lane_dense(logp)
    prob_ref[...] = lane_dense(prob)


def _reorder_gates(w):
    """PyTorch LSTM gate order (i,f,g,o) -> (i,f,o,g) along the last axis."""
    i, f, g, o = jnp.split(w, 4, axis=-1)
    return jnp.concatenate([i, f, o, g], axis=-1)


def _speller_fused(tokens, enc, p):
    """tokens: [B, L] int; enc: [B, S, D] f32 -> (log_probs, probs) each [B, L, V]."""
    B, L = tokens.shape
    S, D = enc.shape[1], enc.shape[2]
    V, H = VOCAB_SIZE, HIDDEN_DIM

    # Host/XLA-side, purely-linear precomputes (tiny, done once per call).
    w_hh_r = _reorder_gates(p["w_hh"])
    b_r = _reorder_gates(p["b_lstm"])
    w_eih = p["embedding"] @ _reorder_gates(p["w_ih"])        # [V, 4H] (gather ∘ input proj)
    w_pq = p["w_proj"] @ p["w_q"]                             # projection folded into W_q
    b_pq = p["b_proj"] @ p["w_q"] + p["b_q"]
    w_kv = jnp.concatenate([p["w_k"], p["w_v"]], axis=1)      # [D, 2D]
    b_kv = jnp.concatenate([p["b_k"], p["b_v"]], axis=1)      # [1, 2D]
    w_og = p["w_o"] @ p["w_gen"]                              # out_proj folded into generator
    b_og = p["b_o"] @ p["w_gen"] + p["b_gen"]

    # time-major flattened token ids (row = t*B + b), matching the kernel's LSTM loop.
    tok_flat = tokens.astype(jnp.int32).T.reshape(L * B, 1)

    full = lambda shape: pl.BlockSpec(shape, lambda i, _s=shape: (0,) * len(_s))

    logp_flat, prob_flat = pl.pallas_call(
        _speller_kernel,
        out_shape=(jax.ShapeDtypeStruct((B, L * V), jnp.float32),
                   jax.ShapeDtypeStruct((B, L * V), jnp.float32)),
        grid_spec=pltpu.PrefetchScalarGridSpec(
            num_scalar_prefetch=0,
            grid=(1,),
            in_specs=[
                full((L * B, 1)),                    # token ids
                full((V, 4 * H)),                    # embedding @ W_ih (gate-reordered)
                full((H, 4 * H)),                    # W_hh (gate-reordered)
                full((1, 4 * H)),                    # b_ih + b_hh (gate-reordered)
                full((B, S, D)),                     # encoder outputs
                full((H, D)), full((1, D)),          # W_pq, b_pq
                full((D, 2 * D)), full((1, 2 * D)),  # W_kv, b_kv
                full((D, V)), full((1, V)),          # W_og, b_og
            ],
            out_specs=(full((B, L * V)), full((B, L * V))),
        ),
        compiler_params=pltpu.CompilerParams(dimension_semantics=("arbitrary",)),
    )(tok_flat, w_eih, w_hh_r, b_r, enc, w_pq, b_pq, w_kv, b_kv, w_og, b_og)

    return logp_flat.reshape(B, L, V), prob_flat.reshape(B, L, V)


_speller_fused_jit = jax.jit(_speller_fused)


# ---------------------------------------------------------------------------
# Parameters (deterministic synthetic init; weights pre-transposed to x @ W,
# LSTM gates stored in PyTorch (i,f,g,o) order — reordering is done in the wrapper)
# ---------------------------------------------------------------------------
def init_params(key):
    ks = jax.random.split(key, 16)
    w = lambda k, shape, s=0.1: (s * jax.random.normal(k, shape)).astype(jnp.float32)
    emb = w(ks[0], (VOCAB_SIZE, EMBED_SIZE)).at[PAD_ID].set(0.0)   # padding_idx=0
    return dict(
        embedding=emb,
        w_ih=w(ks[1], (EMBED_SIZE, 4 * HIDDEN_DIM)),
        w_hh=w(ks[2], (HIDDEN_DIM, 4 * HIDDEN_DIM)),
        b_lstm=w(ks[3], (1, 4 * HIDDEN_DIM)),          # b_ih + b_hh combined
        w_proj=w(ks[4], (HIDDEN_DIM, PROJ_DIM)), b_proj=w(ks[5], (1, PROJ_DIM)),
        w_q=w(ks[6], (PROJ_DIM, PROJ_DIM)), b_q=w(ks[7], (1, PROJ_DIM)),
        w_k=w(ks[8], (PROJ_DIM, PROJ_DIM)), b_k=w(ks[9], (1, PROJ_DIM)),
        w_v=w(ks[10], (PROJ_DIM, PROJ_DIM)), b_v=w(ks[11], (1, PROJ_DIM)),
        w_o=w(ks[12], (PROJ_DIM, PROJ_DIM)), b_o=w(ks[13], (1, PROJ_DIM)),
        w_gen=w(ks[14], (PROJ_DIM, VOCAB_SIZE)), b_gen=w(ks[15], (1, VOCAB_SIZE)),
    )


# ---------------------------------------------------------------------------
# Speller.forward (eval mode, teacher_forcing_ratio=1.0 -> teacher-forcing path)
# ---------------------------------------------------------------------------
def speller_forward(inputs, encoder_outputs, params):
    B = encoder_outputs.shape[0]
    sos = jnp.full((B, 1), SOS_ID, dtype=inputs.dtype)
    tokens = jnp.concatenate([sos, inputs], axis=1)             # cat((sos, inputs), dim=1)
    # inputs are built without EOS tokens, so torch's
    # `inputs[inputs != eos_id].view(B, -1)` is the identity here.
    log_probs, probs = _speller_fused_jit(tokens, encoder_outputs, params)
    L = tokens.shape[1]
    result = [log_probs[:, di, :] for di in range(L)]           # list of [B, V] log-softmax
    result2 = [probs[:, di, :] for di in range(L)]              # list of [B, V] softmax
    output_sequence = None
    return result, output_sequence, result2


# ---------------------------------------------------------------------------
# Pure-JAX reference (original, un-folded parameterization) for correctness check
# ---------------------------------------------------------------------------
def reference_forward(tokens, enc, p):
    emb = p["embedding"][tokens]                                # [B, L, E]

    def step(carry, x_t):
        h, c = carry
        gates = x_t @ p["w_ih"] + h @ p["w_hh"] + p["b_lstm"][0]
        i, f, g, o = jnp.split(gates, 4, axis=-1)
        i, f, o = jax.nn.sigmoid(i), jax.nn.sigmoid(f), jax.nn.sigmoid(o)
        g = jnp.tanh(g)
        c = f * c + i * g
        h = o * jnp.tanh(c)
        return (h, c), h

    B = emb.shape[0]
    init = (jnp.zeros((B, HIDDEN_DIM), jnp.float32), jnp.zeros((B, HIDDEN_DIM), jnp.float32))
    _, hs = jax.lax.scan(step, init, jnp.swapaxes(emb, 0, 1))
    dec = jnp.swapaxes(hs, 0, 1)                                # [B, L, H]

    proj = dec @ p["w_proj"] + p["b_proj"][0]
    q = proj @ p["w_q"] + p["b_q"][0]
    k = enc @ p["w_k"] + p["b_k"][0]
    v = enc @ p["w_v"] + p["b_v"][0]

    def heads(x):
        Bx, T, D = x.shape
        return x.reshape(Bx, T, NUM_HEADS, HEAD_DIM).transpose(0, 2, 1, 3)

    qh = heads(q) / math.sqrt(HEAD_DIM)
    kh, vh = heads(k), heads(v)
    scores = jnp.einsum('bhld,bhsd->bhls', qh, kh)
    attn = jax.nn.softmax(scores, axis=-1)
    ctx = jnp.einsum('bhls,bhsd->bhld', attn, vh)
    ctx = ctx.transpose(0, 2, 1, 3).reshape(dec.shape[0], dec.shape[1], PROJ_DIM)
    out = ctx @ p["w_o"] + p["b_o"][0]
    logits = out @ p["w_gen"] + p["b_gen"][0]
    return jax.nn.log_softmax(logits, -1), jax.nn.softmax(logits, -1)


if __name__ == "__main__":
    key = jax.random.PRNGKey(0)
    k_param, k_tok, k_enc = jax.random.split(key, 3)
    params = init_params(k_param)

    # decoder target tokens (no EOS/PAD so the eos-filter is the identity)
    inputs = jax.random.randint(k_tok, (BATCH, DEC_LEN - 1), 3, VOCAB_SIZE).astype(jnp.int32)
    encoder_outputs = (0.5 * jax.random.normal(k_enc, (BATCH, ENC_LEN, PROJ_DIM))).astype(jnp.float32)

    result, output_sequence, result2 = speller_forward(inputs, encoder_outputs, params)
    jax.block_until_ready(result)
    jax.block_until_ready(result2)

    # verify against pure-JAX reference (un-folded weights, PyTorch gate order)
    sos = jnp.full((BATCH, 1), SOS_ID, dtype=inputs.dtype)
    tokens = jnp.concatenate([sos, inputs], axis=1)
    ref_logp, ref_p = reference_forward(tokens, encoder_outputs, params)
    got_logp = jnp.stack(result, axis=1)
    got_p = jnp.stack(result2, axis=1)
    assert jnp.allclose(got_logp, ref_logp, atol=3e-3, rtol=3e-3), "log-softmax mismatch"
    assert jnp.allclose(got_p, ref_p, atol=3e-3, rtol=3e-3), "softmax mismatch"

    print("KERNEL_OK")
</pallas_src>

<mosaic_0001>
module attributes {stable_mosaic.version = 11 : i64} {
  func.func @_speller_kernel(%arg0: i32, %arg1: memref<16x1xi32, #tpu.memory_space<vmem>>, %arg2: memref<32x128xf32, #tpu.memory_space<vmem>>, %arg3: memref<32x128xf32, #tpu.memory_space<vmem>>, %arg4: memref<1x128xf32, #tpu.memory_space<vmem>>, %arg5: memref<2x16x32xf32, #tpu.memory_space<vmem>>, %arg6: memref<32x32xf32, #tpu.memory_space<vmem>>, %arg7: memref<1x32xf32, #tpu.memory_space<vmem>>, %arg8: memref<32x64xf32, #tpu.memory_space<vmem>>, %arg9: memref<1x64xf32, #tpu.memory_space<vmem>>, %arg10: memref<32x32xf32, #tpu.memory_space<vmem>>, %arg11: memref<1x32xf32, #tpu.memory_space<vmem>>, %arg12: memref<2x256xf32, #tpu.memory_space<vmem>>, %arg13: memref<2x256xf32, #tpu.memory_space<vmem>>) attributes {dimension_semantics = [#tpu.dimension_semantics<arbitrary>], iteration_bounds = array<i64: 1>, scalar_prefetch = 0 : i64, scratch_operands = 0 : i64, tpu.core_type = #tpu.core_type<tc>, window_params = [{pipeline_mode = #tpu.pipeline_mode<synchronous>, transform_indices = @transform_0, window_bounds = array<i64: 16, 1>}, {pipeline_mode = #tpu.pipeline_mode<synchronous>, transform_indices = @transform_1, window_bounds = array<i64: 32, 128>}, {pipeline_mode = #tpu.pipeline_mode<synchronous>, transform_indices = @transform_2, window_bounds = array<i64: 32, 128>}, {pipeline_mode = #tpu.pipeline_mode<synchronous>, transform_indices = @transform_3, window_bounds = array<i64: 1, 128>}, {pipeline_mode = #tpu.pipeline_mode<synchronous>, transform_indices = @transform_4, window_bounds = array<i64: 2, 16, 32>}, {pipeline_mode = #tpu.pipeline_mode<synchronous>, transform_indices = @transform_5, window_bounds = array<i64: 32, 32>}, {pipeline_mode = #tpu.pipeline_mode<synchronous>, transform_indices = @transform_6, window_bounds = array<i64: 1, 32>}, {pipeline_mode = #tpu.pipeline_mode<synchronous>, transform_indices = @transform_7, window_bounds = array<i64: 32, 64>}, {pipeline_mode = #tpu.pipeline_mode<synchronous>, transform_indices = @transform_8, window_bounds = array<i64: 1, 64>}, {pipeline_mode = #tpu.pipeline_mode<synchronous>, transform_indices = @transform_9, window_bounds = array<i64: 32, 32>}, {pipeline_mode = #tpu.pipeline_mode<synchronous>, transform_indices = @transform_10, window_bounds = array<i64: 1, 32>}, {pipeline_mode = #tpu.pipeline_mode<synchronous>, transform_indices = @transform_11, window_bounds = array<i64: 2, 256>}, {pipeline_mode = #tpu.pipeline_mode<synchronous>, transform_indices = @transform_12, window_bounds = array<i64: 2, 256>}]} {
    %0 = tpu.iota {dimensions = array<i32: 1>} : vector<16x32xi32>
    %c0 = arith.constant 0 : index
    %c0_0 = arith.constant 0 : index
    %1 = vector.load %arg1[%c0, %c0_0] : memref<16x1xi32, #tpu.memory_space<vmem>>, vector<16x1xi32>
    %2 = vector.broadcast %1 : vector<16x1xi32> to vector<16x32xi32>
    %3 = arith.cmpi eq, %2, %0 : vector<16x32xi32>
    %4 = arith.extui %3 : vector<16x32xi1> to vector<16x32xi32>
    %5 = arith.sitofp %4 : vector<16x32xi32> to vector<16x32xf32>
    %c0_1 = arith.constant 0 : index
    %c0_2 = arith.constant 0 : index
    %6 = vector.load %arg2[%c0_1, %c0_2] : memref<32x128xf32, #tpu.memory_space<vmem>>, vector<32x128xf32>
    %cst = arith.constant dense<0.000000e+00> : vector<16x128xf32>
    %7 = tpu.matmul %5, %6, %cst {dimension_numbers = #tpu.dot_dimension_numbers<[1], [0], [0], [1], [0, 0, 1, 1], [], []>} : vector<16x32xf32>, vector<32x128xf32>, vector<16x128xf32> -> vector<16x128xf32>
    %c0_3 = arith.constant 0 : index
    %c0_4 = arith.constant 0 : index
    %8 = vector.load %arg4[%c0_3, %c0_4] : memref<1x128xf32, #tpu.memory_space<vmem>>, vector<1x128xf32>
    %9 = vector.broadcast %8 : vector<1x128xf32> to vector<16x128xf32>
    %10 = arith.addf %7, %9 : vector<16x128xf32>
    %c0_5 = arith.constant 0 : index
    %c0_6 = arith.constant 0 : index
    %11 = vector.load %arg3[%c0_5, %c0_6] : memref<32x128xf32, #tpu.memory_space<vmem>>, vector<32x128xf32>
    %cst_7 = arith.constant 0.000000e+00 : f32
    %12 = vector.broadcast %cst_7 : f32 to vector<2x32xf32>
    %cst_8 = arith.constant 0.000000e+00 : f32
    %13 = vector.broadcast %cst_8 : f32 to vector<2x32xf32>
    %14 = vector.extract_strided_slice %10 {offsets = [0, 0], sizes = [2, 128], strides = [1, 1]} : vector<16x128xf32> to vector<2x128xf32>
    %cst_9 = arith.constant dense<0.000000e+00> : vector<2x128xf32>
    %15 = tpu.matmul %12, %11, %cst_9 {dimension_numbers = #tpu.dot_dimension_numbers<[1], [0], [0], [1], [0, 0, 1, 1], [], []>} : vector<2x32xf32>, vector<32x128xf32>, vector<2x128xf32> -> vector<2x128xf32>
    %16 = arith.addf %14, %15 : vector<2x128xf32>
    %17 = vector.extract_strided_slice %16 {offsets = [0, 0], sizes = [2, 96], strides = [1, 1]} : vector<2x128xf32> to vector<2x96xf32>
    %18 = arith.negf %17 : vector<2x96xf32>
    %19 = math.exp %18 : vector<2x96xf32>
    %cst_10 = arith.constant 1.000000e+00 : f32
    %20 = vector.broadcast %cst_10 : f32 to vector<2x96xf32>
    %21 = arith.addf %20, %19 : vector<2x96xf32>
    %22 = arith.divf %20, %21 : vector<2x96xf32>
    %23 = vector.extract_strided_slice %16 {offsets = [0, 96], sizes = [2, 32], strides = [1, 1]} : vector<2x128xf32> to vector<2x32xf32>
    %24 = math.tanh %23 : vector<2x32xf32>
    %25 = vector.extract_strided_slice %22 {offsets = [0, 32], sizes = [2, 32], strides = [1, 1]} : vector<2x96xf32> to vector<2x32xf32>
    %26 = arith.mulf %25, %13 : vector<2x32xf32>
    %27 = vector.extract_strided_slice %22 {offsets = [0, 0], sizes = [2, 32], strides = [1, 1]} : vector<2x96xf32> to vector<2x32xf32>
    %28 = arith.mulf %27, %24 : vector<2x32xf32>
    %29 = arith.addf %26, %28 : vector<2x32xf32>
    %30 = vector.extract_strided_slice %22 {offsets = [0, 64], sizes = [2, 32], strides = [1, 1]} : vector<2x96xf32> to vector<2x32xf32>
    %31 = math.tanh %29 : vector<2x32xf32>
    %32 = arith.mulf %30, %31 : vector<2x32xf32>
    %33 = vector.extract_strided_slice %10 {offsets = [2, 0], sizes = [2, 128], strides = [1, 1]} : vector<16x128xf32> to vector<2x128xf32>
    %cst_11 = arith.constant dense<0.000000e+00> : vector<2x128xf32>
    %34 = tpu.matmul %32, %11, %cst_11 {dimension_numbers = #tpu.dot_dimension_numbers<[1], [0], [0], [1], [0, 0, 1, 1], [], []>} : vector<2x32xf32>, vector<32x128xf32>, vector<2x128xf32> -> vector<2x128xf32>
    %35 = arith.addf %33, %34 : vector<2x128xf32>
    %36 = vector.extract_strided_slice %35 {offsets = [0, 0], sizes = [2, 96], strides = [1, 1]} : vector<2x128xf32> to vector<2x96xf32>
    %37 = arith.negf %36 : vector<2x96xf32>
    %38 = math.exp %37 : vector<2x96xf32>
    %cst_12 = arith.constant 1.000000e+00 : f32
    %39 = vector.broadcast %cst_12 : f32 to vector<2x96xf32>
    %40 = arith.addf %39, %38 : vector<2x96xf32>
    %41 = arith.divf %39, %40 : vector<2x96xf32>
    %42 = vector.extract_strided_slice %35 {offsets = [0, 96], sizes = [2, 32], strides = [1, 1]} : vector<2x128xf32> to vector<2x32xf32>
    %43 = math.tanh %42 : vector<2x32xf32>
    %44 = vector.extract_strided_slice %41 {offsets = [0, 32], sizes = [2, 32], strides = [1, 1]} : vector<2x96xf32> to vector<2x32xf32>
    %45 = arith.mulf %44, %29 : vector<2x32xf32>
    %46 = vector.extract_strided_slice %41 {offsets = [0, 0], sizes = [2, 32], strides = [1, 1]} : vector<2x96xf32> to vector<2x32xf32>
    %47 = arith.mulf %46, %43 : vector<2x32xf32>
    %48 = arith.addf %45, %47 : vector<2x32xf32>
    %49 = vector.extract_strided_slice %41 {offsets = [0, 64], sizes = [2, 32], strides = [1, 1]} : vector<2x96xf32> to vector<2x32xf32>
    %50 = math.tanh %48 : vector<2x32xf32>
    %51 = arith.mulf %49, %50 : vector<2x32xf32>
    %52 = vector.extract_strided_slice %10 {offsets = [4, 0], sizes = [2, 128], strides = [1, 1]} : vector<16x128xf32> to vector<2x128xf32>
    %cst_13 = arith.constant dense<0.000000e+00> : vector<2x128xf32>
    %53 = tpu.matmul %51, %11, %cst_13 {dimension_numbers = #tpu.dot_dimension_numbers<[1], [0], [0], [1], [0, 0, 1, 1], [], []>} : vector<2x32xf32>, vector<32x128xf32>, vector<2x128xf32> -> vector<2x128xf32>
    %54 = arith.addf %52, %53 : vector<2x128xf32>
    %55 = vector.extract_strided_slice %54 {offsets = [0, 0], sizes = [2, 96], strides = [1, 1]} : vector<2x128xf32> to vector<2x96xf32>
    %56 = arith.negf %55 : vector<2x96xf32>
    %57 = math.exp %56 : vector<2x96xf32>
    %cst_14 = arith.constant 1.000000e+00 : f32
    %58 = vector.broadcast %cst_14 : f32 to vector<2x96xf32>
    %59 = arith.addf %58, %57 : vector<2x96xf32>
    %60 = arith.divf %58, %59 : vector<2x96xf32>
    %61 = vector.extract_strided_slice %54 {offsets = [0, 96], sizes = [2, 32], strides = [1, 1]} : vector<2x128xf32> to vector<2x32xf32>
    %62 = math.tanh %61 : vector<2x32xf32>
    %63 = vector.extract_strided_slice %60 {offsets = [0, 32], sizes = [2, 32], strides = [1, 1]} : vector<2x96xf32> to vector<2x32xf32>
    %64 = arith.mulf %63, %48 : vector<2x32xf32>
    %65 = vector.extract_strided_slice %60 {offsets = [0, 0], sizes = [2, 32], strides = [1, 1]} : vector<2x96xf32> to vector<2x32xf32>
    %66 = arith.mulf %65, %62 : vector<2x32xf32>
    %67 = arith.addf %64, %66 : vector<2x32xf32>
    %68 = vector.extract_strided_slice %60 {offsets = [0, 64], sizes = [2, 32], strides = [1, 1]} : vector<2x96xf32> to vector<2x32xf32>
    %69 = math.tanh %67 : vector<2x32xf32>
    %70 = arith.mulf %68, %69 : vector<2x32xf32>
    %71 = vector.extract_strided_slice %10 {offsets = [6, 0], sizes = [2, 128], strides = [1, 1]} : vector<16x128xf32> to vector<2x128xf32>
    %cst_15 = arith.constant dense<0.000000e+00> : vector<2x128xf32>
    %72 = tpu.matmul %70, %11, %cst_15 {dimension_numbers = #tpu.dot_dimension_numbers<[1], [0], [0], [1], [0, 0, 1, 1], [], []>} : vector<2x32xf32>, vector<32x128xf32>, vector<2x128xf32> -> vector<2x128xf32>
    %73 = arith.addf %71, %72 : vector<2x128xf32>
    %74 = vector.extract_strided_slice %73 {offsets = [0, 0], sizes = [2, 96], strides = [1, 1]} : vector<2x128xf32> to vector<2x96xf32>
    %75 = arith.negf %74 : vector<2x96xf32>
    %76 = math.exp %75 : vector<2x96xf32>
    %cst_16 = arith.constant 1.000000e+00 : f32
    %77 = vector.broadcast %cst_16 : f32 to vector<2x96xf32>
    %78 = arith.addf %77, %76 : vector<2x96xf32>
    %79 = arith.divf %77, %78 : vector<2x96xf32>
    %80 = vector.extract_strided_slice %73 {offsets = [0, 96], sizes = [2, 32], strides = [1, 1]} : vector<2x128xf32> to vector<2x32xf32>
    %81 = math.tanh %80 : vector<2x32xf32>
    %82 = vector.extract_strided_slice %79 {offsets = [0, 32], sizes = [2, 32], strides = [1, 1]} : vector<2x96xf32> to vector<2x32xf32>
    %83 = arith.mulf %82, %67 : vector<2x32xf32>
    %84 = vector.extract_strided_slice %79 {offsets = [0, 0], sizes = [2, 32], strides = [1, 1]} : vector<2x96xf32> to vector<2x32xf32>
    %85 = arith.mulf %84, %81 : vector<2x32xf32>
    %86 = arith.addf %83, %85 : vector<2x32xf32>
    %87 = vector.extract_strided_slice %79 {offsets = [0, 64], sizes = [2, 32], strides = [1, 1]} : vector<2x96xf32> to vector<2x32xf32>
    %88 = math.tanh %86 : vector<2x32xf32>
    %89 = arith.mulf %87, %88 : vector<2x32xf32>
    %90 = vector.extract_strided_slice %10 {offsets = [8, 0], sizes = [2, 128], strides = [1, 1]} : vector<16x128xf32> to vector<2x128xf32>
    %cst_17 = arith.constant dense<0.000000e+00> : vector<2x128xf32>
    %91 = tpu.matmul %89, %11, %cst_17 {dimension_numbers = #tpu.dot_dimension_numbers<[1], [0], [0], [1], [0, 0, 1, 1], [], []>} : vector<2x32xf32>, vector<32x128xf32>, vector<2x128xf32> -> vector<2x128xf32>
    %92 = arith.addf %90, %91 : vector<2x128xf32>
    %93 = vector.extract_strided_slice %92 {offsets = [0, 0], sizes = [2, 96], strides = [1, 1]} : vector<2x128xf32> to vector<2x96xf32>
    %94 = arith.negf %93 : vector<2x96xf32>
    %95 = math.exp %94 : vector<2x96xf32>
    %cst_18 = arith.constant 1.000000e+00 : f32
    %96 = vector.broadcast %cst_18 : f32 to vector<2x96xf32>
    %97 = arith.addf %96, %95 : vector<2x96xf32>
    %98 = arith.divf %96, %97 : vector<2x96xf32>
    %99 = vector.extract_strided_slice %92 {offsets = [0, 96], sizes = [2, 32], strides = [1, 1]} : vector<2x128xf32> to vector<2x32xf32>
    %100 = math.tanh %99 : vector<2x32xf32>
    %101 = vector.extract_strided_slice %98 {offsets = [0, 32], sizes = [2, 32], strides = [1, 1]} : vector<2x96xf32> to vector<2x32xf32>
    %102 = arith.mulf %101, %86 : vector<2x32xf32>
    %103 = vector.extract_strided_slice %98 {offsets = [0, 0], sizes = [2, 32], strides = [1, 1]} : vector<2x96xf32> to vector<2x32xf32>
    %104 = arith.mulf %103, %100 : vector<2x32xf32>
    %105 = arith.addf %102, %104 : vector<2x32xf32>
    %106 = vector.extract_strided_slice %98 {offsets = [0, 64], sizes = [2, 32], strides = [1, 1]} : vector<2x96xf32> to vector<2x32xf32>
    %107 = math.tanh %105 : vector<2x32xf32>
    %108 = arith.mulf %106, %107 : vector<2x32xf32>
    %109 = vector.extract_strided_slice %10 {offsets = [10, 0], sizes = [2, 128], strides = [1, 1]} : vector<16x128xf32> to vector<2x128xf32>
    %cst_19 = arith.constant dense<0.000000e+00> : vector<2x128xf32>
    %110 = tpu.matmul %108, %11, %cst_19 {dimension_numbers = #tpu.dot_dimension_numbers<[1], [0], [0], [1], [0, 0, 1, 1], [], []>} : vector<2x32xf32>, vector<32x128xf32>, vector<2x128xf32> -> vector<2x128xf32>
    %111 = arith.addf %109, %110 : vector<2x128xf32>
    %112 = vector.extract_strided_slice %111 {offsets = [0, 0], sizes = [2, 96], strides = [1, 1]} : vector<2x128xf32> to vector<2x96xf32>
    %113 = arith.negf %112 : vector<2x96xf32>
    %114 = math.exp %113 : vector<2x96xf32>
    %cst_20 = arith.constant 1.000000e+00 : f32
    %115 = vector.broadcast %cst_20 : f32 to vector<2x96xf32>
    %116 = arith.addf %115, %114 : vector<2x96xf32>
    %117 = arith.divf %115, %116 : vector<2x96xf32>
    %118 = vector.extract_strided_slice %111 {offsets = [0, 96], sizes = [2, 32], strides = [1, 1]} : vector<2x128xf32> to vector<2x32xf32>
    %119 = math.tanh %118 : vector<2x32xf32>
    %120 = vector.extract_strided_slice %117 {offsets = [0, 32], sizes = [2, 32], strides = [1, 1]} : vector<2x96xf32> to vector<2x32xf32>
    %121 = arith.mulf %120, %105 : vector<2x32xf32>
    %122 = vector.extract_strided_slice %117 {offsets = [0, 0], sizes = [2, 32], strides = [1, 1]} : vector<2x96xf32> to vector<2x32xf32>
    %123 = arith.mulf %122, %119 : vector<2x32xf32>
    %124 = arith.addf %121, %123 : vector<2x32xf32>
    %125 = vector.extract_strided_slice %117 {offsets = [0, 64], sizes = [2, 32], strides = [1, 1]} : vector<2x96xf32> to vector<2x32xf32>
    %126 = math.tanh %124 : vector<2x32xf32>
    %127 = arith.mulf %125, %126 : vector<2x32xf32>
    %128 = vector.extract_strided_slice %10 {offsets = [12, 0], sizes = [2, 128], strides = [1, 1]} : vector<16x128xf32> to vector<2x128xf32>
    %cst_21 = arith.constant dense<0.000000e+00> : vector<2x128xf32>
    %129 = tpu.matmul %127, %11, %cst_21 {dimension_numbers = #tpu.dot_dimension_numbers<[1], [0], [0], [1], [0, 0, 1, 1], [], []>} : vector<2x32xf32>, vector<32x128xf32>, vector<2x128xf32> -> vector<2x128xf32>
    %130 = arith.addf %128, %129 : vector<2x128xf32>
    %131 = vector.extract_strided_slice %130 {offsets = [0, 0], sizes = [2, 96], strides = [1, 1]} : vector<2x128xf32> to vector<2x96xf32>
    %132 = arith.negf %131 : vector<2x96xf32>
    %133 = math.exp %132 : vector<2x96xf32>
    %cst_22 = arith.constant 1.000000e+00 : f32
    %134 = vector.broadcast %cst_22 : f32 to vector<2x96xf32>
    %135 = arith.addf %134, %133 : vector<2x96xf32>
    %136 = arith.divf %134, %135 : vector<2x96xf32>
    %137 = vector.extract_strided_slice %130 {offsets = [0, 96], sizes = [2, 32], strides = [1, 1]} : vector<2x128xf32> to vector<2x32xf32>
    %138 = math.tanh %137 : vector<2x32xf32>
    %139 = vector.extract_strided_slice %136 {offsets = [0, 32], sizes = [2, 32], strides = [1, 1]} : vector<2x96xf32> to vector<2x32xf32>
    %140 = arith.mulf %139, %124 : vector<2x32xf32>
    %141 = vector.extract_strided_slice %136 {offsets = [0, 0], sizes = [2, 32], strides = [1, 1]} : vector<2x96xf32> to vector<2x32xf32>
    %142 = arith.mulf %141, %138 : vector<2x32xf32>
    %143 = arith.addf %140, %142 : vector<2x32xf32>
    %144 = vector.extract_strided_slice %136 {offsets = [0, 64], sizes = [2, 32], strides = [1, 1]} : vector<2x96xf32> to vector<2x32xf32>
    %145 = math.tanh %143 : vector<2x32xf32>
    %146 = arith.mulf %144, %145 : vector<2x32xf32>
    %147 = vector.extract_strided_slice %10 {offsets = [14, 0], sizes = [2, 128], strides = [1, 1]} : vector<16x128xf32> to vector<2x128xf32>
    %cst_23 = arith.constant dense<0.000000e+00> : vector<2x128xf32>
    %148 = tpu.matmul %146, %11, %cst_23 {dimension_numbers = #tpu.dot_dimension_numbers<[1], [0], [0], [1], [0, 0, 1, 1], [], []>} : vector<2x32xf32>, vector<32x128xf32>, vector<2x128xf32> -> vector<2x128xf32>
    %149 = arith.addf %147, %148 : vector<2x128xf32>
    %150 = vector.extract_strided_slice %149 {offsets = [0, 0], sizes = [2, 96], strides = [1, 1]} : vector<2x128xf32> to vector<2x96xf32>
    %151 = arith.negf %150 : vector<2x96xf32>
    %152 = math.exp %151 : vector<2x96xf32>
    %cst_24 = arith.constant 1.000000e+00 : f32
    %153 = vector.broadcast %cst_24 : f32 to vector<2x96xf32>
    %154 = arith.addf %153, %152 : vector<2x96xf32>
    %155 = arith.divf %153, %154 : vector<2x96xf32>
    %156 = vector.extract_strided_slice %149 {offsets = [0, 96], sizes = [2, 32], strides = [1, 1]} : vector<2x128xf32> to vector<2x32xf32>
    %157 = math.tanh %156 : vector<2x32xf32>
    %158 = vector.extract_strided_slice %155 {offsets = [0, 32], sizes = [2, 32], strides = [1, 1]} : vector<2x96xf32> to vector<2x32xf32>
    %159 = arith.mulf %158, %143 : vector<2x32xf32>
    %160 = vector.extract_strided_slice %155 {offsets = [0, 0], sizes = [2, 32], strides = [1, 1]} : vector<2x96xf32> to vector<2x32xf32>
    %161 = arith.mulf %160, %157 : vector<2x32xf32>
    %162 = arith.addf %159, %161 : vector<2x32xf32>
    %163 = vector.extract_strided_slice %155 {offsets = [0, 64], sizes = [2, 32], strides = [1, 1]} : vector<2x96xf32> to vector<2x32xf32>
    %164 = math.tanh %162 : vector<2x32xf32>
    %165 = arith.mulf %163, %164 : vector<2x32xf32>
    %166 = vector.extract_strided_slice %32 {offsets = [0, 0], sizes = [1, 32], strides = [1, 1]} : vector<2x32xf32> to vector<1x32xf32>
    %167 = vector.extract_strided_slice %51 {offsets = [0, 0], sizes = [1, 32], strides = [1, 1]} : vector<2x32xf32> to vector<1x32xf32>
    %168 = vector.extract_strided_slice %70 {offsets = [0, 0], sizes = [1, 32], strides = [1, 1]} : vector<2x32xf32> to vector<1x32xf32>
    %169 = vector.extract_strided_slice %89 {offsets = [0, 0], sizes = [1, 32], strides = [1, 1]} : vector<2x32xf32> to vector<1x32xf32>
    %170 = vector.extract_strided_slice %108 {offsets = [0, 0], sizes = [1, 32], strides = [1, 1]} : vector<2x32xf32> to vector<1x32xf32>
    %171 = vector.extract_strided_slice %127 {offsets = [0, 0], sizes = [1, 32], strides = [1, 1]} : vector<2x32xf32> to vector<1x32xf32>
    %172 = vector.extract_strided_slice %146 {offsets = [0, 0], sizes = [1, 32], strides = [1, 1]} : vector<2x32xf32> to vector<1x32xf32>
    %173 = vector.extract_strided_slice %165 {offsets = [0, 0], sizes = [1, 32], strides = [1, 1]} : vector<2x32xf32> to vector<1x32xf32>
    %174 = tpu.concatenate %166, %167, %168, %169, %170, %171, %172, %173 in 0 : vector<1x32xf32>, vector<1x32xf32>, vector<1x32xf32>, vector<1x32xf32>, vector<1x32xf32>, vector<1x32xf32>, vector<1x32xf32>, vector<1x32xf32> -> vector<8x32xf32>
    %175 = vector.extract_strided_slice %32 {offsets = [1, 0], sizes = [1, 32], strides = [1, 1]} : vector<2x32xf32> to vector<1x32xf32>
    %176 = vector.extract_strided_slice %51 {offsets = [1, 0], sizes = [1, 32], strides = [1, 1]} : vector<2x32xf32> to vector<1x32xf32>
    %177 = vector.extract_strided_slice %70 {offsets = [1, 0], sizes = [1, 32], strides = [1, 1]} : vector<2x32xf32> to vector<1x32xf32>
    %178 = vector.extract_strided_slice %89 {offsets = [1, 0], sizes = [1, 32], strides = [1, 1]} : vector<2x32xf32> to vector<1x32xf32>
    %179 = vector.extract_strided_slice %108 {offsets = [1, 0], sizes = [1, 32], strides = [1, 1]} : vector<2x32xf32> to vector<1x32xf32>
    %180 = vector.extract_strided_slice %127 {offsets = [1, 0], sizes = [1, 32], strides = [1, 1]} : vector<2x32xf32> to vector<1x32xf32>
    %181 = vector.extract_strided_slice %146 {offsets = [1, 0], sizes = [1, 32], strides = [1, 1]} : vector<2x32xf32> to vector<1x32xf32>
    %182 = vector.extract_strided_slice %165 {offsets = [1, 0], sizes = [1, 32], strides = [1, 1]} : vector<2x32xf32> to vector<1x32xf32>
    %183 = tpu.concatenate %175, %176, %177, %178, %179, %180, %181, %182 in 0 : vector<1x32xf32>, vector<1x32xf32>, vector<1x32xf32>, vector<1x32xf32>, vector<1x32xf32>, vector<1x32xf32>, vector<1x32xf32>, vector<1x32xf32> -> vector<8x32xf32>
    %184 = tpu.concatenate %174, %183 in 0 : vector<8x32xf32>, vector<8x32xf32> -> vector<16x32xf32>
    %c0_25 = arith.constant 0 : index
    %c0_26 = arith.constant 0 : index
    %185 = vector.load %arg6[%c0_25, %c0_26] : memref<32x32xf32, #tpu.memory_space<vmem>>, vector<32x32xf32>
    %cst_27 = arith.constant dense<0.000000e+00> : vector<16x32xf32>
    %186 = tpu.matmul %184, %185, %cst_27 {dimension_numbers = #tpu.dot_dimension_numbers<[1], [0], [0], [1], [0, 0, 1, 1], [], []>} : vector<16x32xf32>, vector<32x32xf32>, vector<16x32xf32> -> vector<16x32xf32>
    %c0_28 = arith.constant 0 : index
    %c0_29 = arith.constant 0 : index
    %187 = vector.load %arg7[%c0_28, %c0_29] : memref<1x32xf32, #tpu.memory_space<vmem>>, vector<1x32xf32>
    %188 = vector.broadcast %187 : vector<1x32xf32> to vector<16x32xf32>
    %189 = arith.addf %186, %188 : vector<16x32xf32>
    %c0_30 = arith.constant 0 : index
    %c0_31 = arith.constant 0 : index
    %c0_32 = arith.constant 0 : index
    %190 = vector.load %arg5[%c0_30, %c0_31, %c0_32] : memref<2x16x32xf32, #tpu.memory_space<vmem>>, vector<2x16x32xf32>
    %191 = vector.shape_cast %190 : vector<2x16x32xf32> to vector<32x32xf32>
    %c0_33 = arith.constant 0 : index
    %c0_34 = arith.constant 0 : index
    %192 = vector.load %arg8[%c0_33, %c0_34] : memref<32x64xf32, #tpu.memory_space<vmem>>, vector<32x64xf32>
    %cst_35 = arith.constant dense<0.000000e+00> : vector<32x64xf32>
    %193 = tpu.matmul %191, %192, %cst_35 {dimension_numbers = #tpu.dot_dimension_numbers<[1], [0], [0], [1], [0, 0, 1, 1], [], []>} : vector<32x32xf32>, vector<32x64xf32>, vector<32x64xf32> -> vector<32x64xf32>
    %c0_36 = arith.constant 0 : index
    %c0_37 = arith.constant 0 : index
    %194 = vector.load %arg9[%c0_36, %c0_37] : memref<1x64xf32, #tpu.memory_space<vmem>>, vector<1x64xf32>
    %195 = vector.broadcast %194 : vector<1x64xf32> to vector<32x64xf32>
    %196 = arith.addf %193, %195 : vector<32x64xf32>
    %197 = vector.extract_strided_slice %189 {offsets = [0, 0], sizes = [16, 8], strides = [1, 1]} : vector<16x32xf32> to vector<16x8xf32>
    %cst_38 = arith.constant 0.353553385 : f32
    %198 = vector.broadcast %cst_38 : f32 to vector<16x8xf32>
    %199 = arith.mulf %197, %198 : vector<16x8xf32>
    %200 = vector.shape_cast %199 : vector<16x8xf32> to vector<2x8x8xf32>
    %201 = vector.extract_strided_slice %196 {offsets = [0, 0], sizes = [32, 8], strides = [1, 1]} : vector<32x64xf32> to vector<32x8xf32>
    %202 = vector.shape_cast %201 : vector<32x8xf32> to vector<2x16x8xf32>
    %203 = vector.extract_strided_slice %196 {offsets = [0, 32], sizes = [32, 8], strides = [1, 1]} : vector<32x64xf32> to vector<32x8xf32>
    %204 = vector.shape_cast %203 : vector<32x8xf32> to vector<2x16x8xf32>
    "tpu.trace_start"() <{level = 10 : i32, message = "bld,bsd->bls"}> : () -> ()
    %cst_39 = arith.constant dense<0.000000e+00> : vector<2x8x16xf32>
    %205 = tpu.matmul %200, %202, %cst_39 {dimension_numbers = #tpu.dot_dimension_numbers<[2], [2], [1], [1], [0, 0, 0, 1, 1, 1], [0], [0]>} : vector<2x8x8xf32>, vector<2x16x8xf32>, vector<2x8x16xf32> -> vector<2x8x16xf32>
    "tpu.trace_stop"() : () -> ()
    %cst_40 = arith.constant dense<0xFF800000> : vector<2x8xf32>
    %206 = vector.multi_reduction <maximumf>, %205, %cst_40 [2] : vector<2x8x16xf32> to vector<2x8xf32>
    %207 = vector.shape_cast %206 : vector<2x8xf32> to vector<2x8x1xf32>
    %208 = vector.broadcast %207 : vector<2x8x1xf32> to vector<2x8x16xf32>
    %209 = arith.subf %205, %208 : vector<2x8x16xf32>
    %210 = math.exp %209 : vector<2x8x16xf32>
    %cst_41 = arith.constant dense<0.000000e+00> : vector<2x8xf32>
    %211 = vector.multi_reduction <add>, %210, %cst_41 [2] : vector<2x8x16xf32> to vector<2x8xf32>
    %212 = vector.shape_cast %211 : vector<2x8xf32> to vector<2x8x1xf32>
    %213 = vector.broadcast %212 : vector<2x8x1xf32> to vector<2x8x16xf32>
    %214 = arith.divf %210, %213 : vector<2x8x16xf32>
    "tpu.trace_start"() <{level = 10 : i32, message = "bls,bsd->bld"}> : () -> ()
    %cst_42 = arith.constant dense<0.000000e+00> : vector<2x8x8xf32>
    %215 = tpu.matmul %214, %204, %cst_42 {dimension_numbers = #tpu.dot_dimension_numbers<[2], [1], [1], [2], [0, 0, 0, 1, 1, 2], [0], [0]>} : vector<2x8x16xf32>, vector<2x16x8xf32>, vector<2x8x8xf32> -> vector<2x8x8xf32>
    "tpu.trace_stop"() : () -> ()
    %216 = vector.shape_cast %215 : vector<2x8x8xf32> to vector<16x8xf32>
    %217 = vector.extract_strided_slice %189 {offsets = [0, 8], sizes = [16, 8], strides = [1, 1]} : vector<16x32xf32> to vector<16x8xf32>
    %cst_43 = arith.constant 0.353553385 : f32
    %218 = vector.broadcast %cst_43 : f32 to vector<16x8xf32>
    %219 = arith.mulf %217, %218 : vector<16x8xf32>
    %220 = vector.shape_cast %219 : vector<16x8xf32> to vector<2x8x8xf32>
    %221 = vector.extract_strided_slice %196 {offsets = [0, 8], sizes = [32, 8], strides = [1, 1]} : vector<32x64xf32> to vector<32x8xf32>
    %222 = vector.shape_cast %221 : vector<32x8xf32> to vector<2x16x8xf32>
    %223 = vector.extract_strided_slice %196 {offsets = [0, 40], sizes = [32, 8], strides = [1, 1]} : vector<32x64xf32> to vector<32x8xf32>
    %224 = vector.shape_cast %223 : vector<32x8xf32> to vector<2x16x8xf32>
    "tpu.trace_start"() <{level = 10 : i32, message = "bld,bsd->bls"}> : () -> ()
    %cst_44 = arith.constant dense<0.000000e+00> : vector<2x8x16xf32>
    %225 = tpu.matmul %220, %222, %cst_44 {dimension_numbers = #tpu.dot_dimension_numbers<[2], [2], [1], [1], [0, 0, 0, 1, 1, 1], [0], [0]>} : vector<2x8x8xf32>, vector<2x16x8xf32>, vector<2x8x16xf32> -> vector<2x8x16xf32>
    "tpu.trace_stop"() : () -> ()
    %cst_45 = arith.constant dense<0xFF800000> : vector<2x8xf32>
    %226 = vector.multi_reduction <maximumf>, %225, %cst_45 [2] : vector<2x8x16xf32> to vector<2x8xf32>
    %227 = vector.shape_cast %226 : vector<2x8xf32> to vector<2x8x1xf32>
    %228 = vector.broadcast %227 : vector<2x8x1xf32> to vector<2x8x16xf32>
    %229 = arith.subf %225, %228 : vector<2x8x16xf32>
    %230 = math.exp %229 : vector<2x8x16xf32>
    %cst_46 = arith.constant dense<0.000000e+00> : vector<2x8xf32>
    %231 = vector.multi_reduction <add>, %230, %cst_46 [2] : vector<2x8x16xf32> to vector<2x8xf32>
    %232 = vector.shape_cast %231 : vector<2x8xf32> to vector<2x8x1xf32>
    %233 = vector.broadcast %232 : vector<2x8x1xf32> to vector<2x8x16xf32>
    %234 = arith.divf %230, %233 : vector<2x8x16xf32>
    "tpu.trace_start"() <{level = 10 : i32, message = "bls,bsd->bld"}> : () -> ()
    %cst_47 = arith.constant dense<0.000000e+00> : vector<2x8x8xf32>
    %235 = tpu.matmul %234, %224, %cst_47 {dimension_numbers = #tpu.dot_dimension_numbers<[2], [1], [1], [2], [0, 0, 0, 1, 1, 2], [0], [0]>} : vector<2x8x16xf32>, vector<2x16x8xf32>, vector<2x8x8xf32> -> vector<2x8x8xf32>
    "tpu.trace_stop"() : () -> ()
    %236 = vector.shape_cast %235 : vector<2x8x8xf32> to vector<16x8xf32>
    %237 = vector.extract_strided_slice %189 {offsets = [0, 16], sizes = [16, 8], strides = [1, 1]} : vector<16x32xf32> to vector<16x8xf32>
    %cst_48 = arith.constant 0.353553385 : f32
    %238 = vector.broadcast %cst_48 : f32 to vector<16x8xf32>
    %239 = arith.mulf %237, %238 : vector<16x8xf32>
    %240 = vector.shape_cast %239 : vector<16x8xf32> to vector<2x8x8xf32>
    %241 = vector.extract_strided_slice %196 {offsets = [0, 16], sizes = [32, 8], strides = [1, 1]} : vector<32x64xf32> to vector<32x8xf32>
    %242 = vector.shape_cast %241 : vector<32x8xf32> to vector<2x16x8xf32>
    %243 = vector.extract_strided_slice %196 {offsets = [0, 48], sizes = [32, 8], strides = [1, 1]} : vector<32x64xf32> to vector<32x8xf32>
    %244 = vector.shape_cast %243 : vector<32x8xf32> to vector<2x16x8xf32>
    "tpu.trace_start"() <{level = 10 : i32, message = "bld,bsd->bls"}> : () -> ()
    %cst_49 = arith.constant dense<0.000000e+00> : vector<2x8x16xf32>
    %245 = tpu.matmul %240, %242, %cst_49 {dimension_numbers = #tpu.dot_dimension_numbers<[2], [2], [1], [1], [0, 0, 0, 1, 1, 1], [0], [0]>} : vector<2x8x8xf32>, vector<2x16x8xf32>, vector<2x8x16xf32> -> vector<2x8x16xf32>
    "tpu.trace_stop"() : () -> ()
    %cst_50 = arith.constant dense<0xFF800000> : vector<2x8xf32>
    %246 = vector.multi_reduction <maximumf>, %245, %cst_50 [2] : vector<2x8x16xf32> to vector<2x8xf32>
    %247 = vector.shape_cast %246 : vector<2x8xf32> to vector<2x8x1xf32>
    %248 = vector.broadcast %247 : vector<2x8x1xf32> to vector<2x8x16xf32>
    %249 = arith.subf %245, %248 : vector<2x8x16xf32>
    %250 = math.exp %249 : vector<2x8x16xf32>
    %cst_51 = arith.constant dense<0.000000e+00> : vector<2x8xf32>
    %251 = vector.multi_reduction <add>, %250, %cst_51 [2] : vector<2x8x16xf32> to vector<2x8xf32>
    %252 = vector.shape_cast %251 : vector<2x8xf32> to vector<2x8x1xf32>
    %253 = vector.broadcast %252 : vector<2x8x1xf32> to vector<2x8x16xf32>
    %254 = arith.divf %250, %253 : vector<2x8x16xf32>
    "tpu.trace_start"() <{level = 10 : i32, message = "bls,bsd->bld"}> : () -> ()
    %cst_52 = arith.constant dense<0.000000e+00> : vector<2x8x8xf32>
    %255 = tpu.matmul %254, %244, %cst_52 {dimension_numbers = #tpu.dot_dimension_numbers<[2], [1], [1], [2], [0, 0, 0, 1, 1, 2], [0], [0]>} : vector<2x8x16xf32>, vector<2x16x8xf32>, vector<2x8x8xf32> -> vector<2x8x8xf32>
    "tpu.trace_stop"() : () -> ()
    %256 = vector.shape_cast %255 : vector<2x8x8xf32> to vector<16x8xf32>
    %257 = vector.extract_strided_slice %189 {offsets = [0, 24], sizes = [16, 8], strides = [1, 1]} : vector<16x32xf32> to vector<16x8xf32>
    %cst_53 = arith.constant 0.353553385 : f32
    %258 = vector.broadcast %cst_53 : f32 to vector<16x8xf32>
    %259 = arith.mulf %257, %258 : vector<16x8xf32>
    %260 = vector.shape_cast %259 : vector<16x8xf32> to vector<2x8x8xf32>
    %261 = vector.extract_strided_slice %196 {offsets = [0, 24], sizes = [32, 8], strides = [1, 1]} : vector<32x64xf32> to vector<32x8xf32>
    %262 = vector.shape_cast %261 : vector<32x8xf32> to vector<2x16x8xf32>
    %263 = vector.extract_strided_slice %196 {offsets = [0, 56], sizes = [32, 8], strides = [1, 1]} : vector<32x64xf32> to vector<32x8xf32>
    %264 = vector.shape_cast %263 : vector<32x8xf32> to vector<2x16x8xf32>
    "tpu.trace_start"() <{level = 10 : i32, message = "bld,bsd->bls"}> : () -> ()
    %cst_54 = arith.constant dense<0.000000e+00> : vector<2x8x16xf32>
    %265 = tpu.matmul %260, %262, %cst_54 {dimension_numbers = #tpu.dot_dimension_numbers<[2], [2], [1], [1], [0, 0, 0, 1, 1, 1], [0], [0]>} : vector<2x8x8xf32>, vector<2x16x8xf32>, vector<2x8x16xf32> -> vector<2x8x16xf32>
    "tpu.trace_stop"() : () -> ()
    %cst_55 = arith.constant dense<0xFF800000> : vector<2x8xf32>
    %266 = vector.multi_reduction <maximumf>, %265, %cst_55 [2] : vector<2x8x16xf32> to vector<2x8xf32>
    %267 = vector.shape_cast %266 : vector<2x8xf32> to vector<2x8x1xf32>
    %268 = vector.broadcast %267 : vector<2x8x1xf32> to vector<2x8x16xf32>
    %269 = arith.subf %265, %268 : vector<2x8x16xf32>
    %270 = math.exp %269 : vector<2x8x16xf32>
    %cst_56 = arith.constant dense<0.000000e+00> : vector<2x8xf32>
    %271 = vector.multi_reduction <add>, %270, %cst_56 [2] : vector<2x8x16xf32> to vector<2x8xf32>
    %272 = vector.shape_cast %271 : vector<2x8xf32> to vector<2x8x1xf32>
    %273 = vector.broadcast %272 : vector<2x8x1xf32> to vector<2x8x16xf32>
    %274 = arith.divf %270, %273 : vector<2x8x16xf32>
    "tpu.trace_start"() <{level = 10 : i32, message = "bls,bsd->bld"}> : () -> ()
    %cst_57 = arith.constant dense<0.000000e+00> : vector<2x8x8xf32>
    %275 = tpu.matmul %274, %264, %cst_57 {dimension_numbers = #tpu.dot_dimension_numbers<[2], [1], [1], [2], [0, 0, 0, 1, 1, 2], [0], [0]>} : vector<2x8x16xf32>, vector<2x16x8xf32>, vector<2x8x8xf32> -> vector<2x8x8xf32>
    "tpu.trace_stop"() : () -> ()
    %276 = vector.shape_cast %275 : vector<2x8x8xf32> to vector<16x8xf32>
    %277 = tpu.concatenate %216, %236, %256, %276 in 1 : vector<16x8xf32>, vector<16x8xf32>, vector<16x8xf32>, vector<16x8xf32> -> vector<16x32xf32>
    %c0_58 = arith.constant 0 : index
    %c0_59 = arith.constant 0 : index
    %278 = vector.load %arg10[%c0_58, %c0_59] : memref<32x32xf32, #tpu.memory_space<vmem>>, vector<32x32xf32>
    %cst_60 = arith.constant dense<0.000000e+00> : vector<16x32xf32>
    %279 = tpu.matmul %277, %278, %cst_60 {dimension_numbers = #tpu.dot_dimension_numbers<[1], [0], [0], [1], [0, 0, 1, 1], [], []>} : vector<16x32xf32>, vector<32x32xf32>, vector<16x32xf32> -> vector<16x32xf32>
    %c0_61 = arith.constant 0 : index
    %c0_62 = arith.constant 0 : index
    %280 = vector.load %arg11[%c0_61, %c0_62] : memref<1x32xf32, #tpu.memory_space<vmem>>, vector<1x32xf32>
    %281 = vector.broadcast %280 : vector<1x32xf32> to vector<16x32xf32>
    %282 = arith.addf %279, %281 : vector<16x32xf32>
    %cst_63 = arith.constant dense<0xFF800000> : vector<16xf32>
    %283 = vector.multi_reduction <maximumf>, %282, %cst_63 [1] : vector<16x32xf32> to vector<16xf32>
    %284 = vector.shape_cast %283 : vector<16xf32> to vector<16x1xf32>
    %285 = vector.broadcast %284 : vector<16x1xf32> to vector<16x32xf32>
    %286 = arith.subf %282, %285 : vector<16x32xf32>
    %287 = math.exp %286 : vector<16x32xf32>
    %cst_64 = arith.constant dense<0.000000e+00> : vector<16xf32>
    %288 = vector.multi_reduction <add>, %287, %cst_64 [1] : vector<16x32xf32> to vector<16xf32>
    %289 = vector.shape_cast %288 : vector<16xf32> to vector<16x1xf32>
    %290 = vector.broadcast %284 : vector<16x1xf32> to vector<16x32xf32>
    %291 = arith.subf %282, %290 : vector<16x32xf32>
    %292 = math.log %289 : vector<16x1xf32>
    %293 = vector.broadcast %292 : vector<16x1xf32> to vector<16x32xf32>
    %294 = arith.subf %291, %293 : vector<16x32xf32>
    %295 = vector.broadcast %289 : vector<16x1xf32> to vector<16x32xf32>
    %296 = arith.divf %287, %295 : vector<16x32xf32>
    %297 = vector.extract_strided_slice %294 {offsets = [0, 0], sizes = [1, 32], strides = [1, 1]} : vector<16x32xf32> to vector<1x32xf32>
    %298 = vector.extract_strided_slice %294 {offsets = [1, 0], sizes = [1, 32], strides = [1, 1]} : vector<16x32xf32> to vector<1x32xf32>
    %299 = vector.extract_strided_slice %294 {offsets = [2, 0], sizes = [1, 32], strides = [1, 1]} : vector<16x32xf32> to vector<1x32xf32>
    %300 = vector.extract_strided_slice %294 {offsets = [3, 0], sizes = [1, 32], strides = [1, 1]} : vector<16x32xf32> to vector<1x32xf32>
    %301 = vector.extract_strided_slice %294 {offsets = [4, 0], sizes = [1, 32], strides = [1, 1]} : vector<16x32xf32> to vector<1x32xf32>
    %302 = vector.extract_strided_slice %294 {offsets = [5, 0], sizes = [1, 32], strides = [1, 1]} : vector<16x32xf32> to vector<1x32xf32>
    %303 = vector.extract_strided_slice %294 {offsets = [6, 0], sizes = [1, 32], strides = [1, 1]} : vector<16x32xf32> to vector<1x32xf32>
    %304 = vector.extract_strided_slice %294 {offsets = [7, 0], sizes = [1, 32], strides = [1, 1]} : vector<16x32xf32> to vector<1x32xf32>
    %305 = tpu.concatenate %297, %298, %299, %300, %301, %302, %303, %304 in 1 : vector<1x32xf32>, vector<1x32xf32>, vector<1x32xf32>, vector<1x32xf32>, vector<1x32xf32>, vector<1x32xf32>, vector<1x32xf32>, vector<1x32xf32> -> vector<1x256xf32>
    %306 = vector.extract_strided_slice %294 {offsets = [8, 0], sizes = [1, 32], strides = [1, 1]} : vector<16x32xf32> to vector<1x32xf32>
    %307 = vector.extract_strided_slice %294 {offsets = [9, 0], sizes = [1, 32], strides = [1, 1]} : vector<16x32xf32> to vector<1x32xf32>
    %308 = vector.extract_strided_slice %294 {offsets = [10, 0], sizes = [1, 32], strides = [1, 1]} : vector<16x32xf32> to vector<1x32xf32>
    %309 = vector.extract_strided_slice %294 {offsets = [11, 0], sizes = [1, 32], strides = [1, 1]} : vector<16x32xf32> to vector<1x32xf32>
    %310 = vector.extract_strided_slice %294 {offsets = [12, 0], sizes = [1, 32], strides = [1, 1]} : vector<16x32xf32> to vector<1x32xf32>
    %311 = vector.extract_strided_slice %294 {offsets = [13, 0], sizes = [1, 32], strides = [1, 1]} : vector<16x32xf32> to vector<1x32xf32>
    %312 = vector.extract_strided_slice %294 {offsets = [14, 0], sizes = [1, 32], strides = [1, 1]} : vector<16x32xf32> to vector<1x32xf32>
    %313 = vector.extract_strided_slice %294 {offsets = [15, 0], sizes = [1, 32], strides = [1, 1]} : vector<16x32xf32> to vector<1x32xf32>
    %314 = tpu.concatenate %306, %307, %308, %309, %310, %311, %312, %313 in 1 : vector<1x32xf32>, vector<1x32xf32>, vector<1x32xf32>, vector<1x32xf32>, vector<1x32xf32>, vector<1x32xf32>, vector<1x32xf32>, vector<1x32xf32> -> vector<1x256xf32>
    %315 = tpu.concatenate %305, %314 in 0 : vector<1x256xf32>, vector<1x256xf32> -> vector<2x256xf32>
    %c0_65 = arith.constant 0 : index
    %c0_66 = arith.constant 0 : index
    %316 = vector.load %arg12[%c0_65, %c0_66] : memref<2x256xf32, #tpu.memory_space<vmem>>, vector<2x256xf32>
    tpu.vector_store %arg12[%c0_65, %c0_66], %315 {strides = array<i32>} : memref<2x256xf32, #tpu.memory_space<vmem>>, vector<2x256xf32>,
    %317 = vector.extract_strided_slice %296 {offsets = [0, 0], sizes = [1, 32], strides = [1, 1]} : vector<16x32xf32> to vector<1x32xf32>
    %318 = vector.extract_strided_slice %296 {offsets = [1, 0], sizes = [1, 32], strides = [1, 1]} : vector<16x32xf32> to vector<1x32xf32>
    %319 = vector.extract_strided_slice %296 {offsets = [2, 0], sizes = [1, 32], strides = [1, 1]} : vector<16x32xf32> to vector<1x32xf32>
    %320 = vector.extract_strided_slice %296 {offsets = [3, 0], sizes = [1, 32], strides = [1, 1]} : vector<16x32xf32> to vector<1x32xf32>
    %321 = vector.extract_strided_slice %296 {offsets = [4, 0], sizes = [1, 32], strides = [1, 1]} : vector<16x32xf32> to vector<1x32xf32>
    %322 = vector.extract_strided_slice %296 {offsets = [5, 0], sizes = [1, 32], strides = [1, 1]} : vector<16x32xf32> to vector<1x32xf32>
    %323 = vector.extract_strided_slice %296 {offsets = [6, 0], sizes = [1, 32], strides = [1, 1]} : vector<16x32xf32> to vector<1x32xf32>
    %324 = vector.extract_strided_slice %296 {offsets = [7, 0], sizes = [1, 32], strides = [1, 1]} : vector<16x32xf32> to vector<1x32xf32>
    %325 = tpu.concatenate %317, %318, %319, %320, %321, %322, %323, %324 in 1 : vector<1x32xf32>, vector<1x32xf32>, vector<1x32xf32>, vector<1x32xf32>, vector<1x32xf32>, vector<1x32xf32>, vector<1x32xf32>, vector<1x32xf32> -> vector<1x256xf32>
    %326 = vector.extract_strided_slice %296 {offsets = [8, 0], sizes = [1, 32], strides = [1, 1]} : vector<16x32xf32> to vector<1x32xf32>
    %327 = vector.extract_strided_slice %296 {offsets = [9, 0], sizes = [1, 32], strides = [1, 1]} : vector<16x32xf32> to vector<1x32xf32>
    %328 = vector.extract_strided_slice %296 {offsets = [10, 0], sizes = [1, 32], strides = [1, 1]} : vector<16x32xf32> to vector<1x32xf32>
    %329 = vector.extract_strided_slice %296 {offsets = [11, 0], sizes = [1, 32], strides = [1, 1]} : vector<16x32xf32> to vector<1x32xf32>
    %330 = vector.extract_strided_slice %296 {offsets = [12, 0], sizes = [1, 32], strides = [1, 1]} : vector<16x32xf32> to vector<1x32xf32>
    %331 = vector.extract_strided_slice %296 {offsets = [13, 0], sizes = [1, 32], strides = [1, 1]} : vector<16x32xf32> to vector<1x32xf32>
    %332 = vector.extract_strided_slice %296 {offsets = [14, 0], sizes = [1, 32], strides = [1, 1]} : vector<16x32xf32> to vector<1x32xf32>
    %333 = vector.extract_strided_slice %296 {offsets = [15, 0], sizes = [1, 32], strides = [1, 1]} : vector<16x32xf32> to vector<1x32xf32>
    %334 = tpu.concatenate %326, %327, %328, %329, %330, %331, %332, %333 in 1 : vector<1x32xf32>, vector<1x32xf32>, vector<1x32xf32>, vector<1x32xf32>, vector<1x32xf32>, vector<1x32xf32>, vector<1x32xf32>, vector<1x32xf32> -> vector<1x256xf32>
    %335 = tpu.concatenate %325, %334 in 0 : vector<1x256xf32>, vector<1x256xf32> -> vector<2x256xf32>
    %c0_67 = arith.constant 0 : index
    %c0_68 = arith.constant 0 : index
    %336 = vector.load %arg13[%c0_67, %c0_68] : memref<2x256xf32, #tpu.memory_space<vmem>>, vector<2x256xf32>
    tpu.vector_store %arg13[%c0_67, %c0_68], %335 {strides = array<i32>} : memref<2x256xf32, #tpu.memory_space<vmem>>, vector<2x256xf32>,
    return
  }
  func.func @transform_0(%arg0: i32) -> (i32, i32) {
    %c0_i32 = arith.constant 0 : i32
    %c0_i32_0 = arith.constant 0 : i32
    %c0_i32_1 = arith.constant 0 : i32
    return %c0_i32, %c0_i32_0 : i32, i32
  }
  func.func @transform_1(%arg0: i32) -> (i32, i32) {
    %c0_i32 = arith.constant 0 : i32
    %c0_i32_0 = arith.constant 0 : i32
    %c0_i32_1 = arith.constant 0 : i32
    return %c0_i32, %c0_i32_0 : i32, i32
  }
  func.func @transform_2(%arg0: i32) -> (i32, i32) {
    %c0_i32 = arith.constant 0 : i32
    %c0_i32_0 = arith.constant 0 : i32
    %c0_i32_1 = arith.constant 0 : i32
    return %c0_i32, %c0_i32_0 : i32, i32
  }
  func.func @transform_3(%arg0: i32) -> (i32, i32) {
    %c0_i32 = arith.constant 0 : i32
    %c0_i32_0 = arith.constant 0 : i32
    %c0_i32_1 = arith.constant 0 : i32
    return %c0_i32, %c0_i32_0 : i32, i32
  }
  func.func @transform_4(%arg0: i32) -> (i32, i32, i32) {
    %c0_i32 = arith.constant 0 : i32
    %c0_i32_0 = arith.constant 0 : i32
    %c0_i32_1 = arith.constant 0 : i32
    %c0_i32_2 = arith.constant 0 : i32
    return %c0_i32, %c0_i32_0, %c0_i32_1 : i32, i32, i32
  }
  func.func @transform_5(%arg0: i32) -> (i32, i32) {
    %c0_i32 = arith.constant 0 : i32
    %c0_i32_0 = arith.constant 0 : i32
    %c0_i32_1 = arith.constant 0 : i32
    return %c0_i32, %c0_i32_0 : i32, i32
  }
  func.func @transform_6(%arg0: i32) -> (i32, i32) {
    %c0_i32 = arith.constant 0 : i32
    %c0_i32_0 = arith.constant 0 : i32
    %c0_i32_1 = arith.constant 0 : i32
    return %c0_i32, %c0_i32_0 : i32, i32
  }
  func.func @transform_7(%arg0: i32) -> (i32, i32) {
    %c0_i32 = arith.constant 0 : i32
    %c0_i32_0 = arith.constant 0 : i32
    %c0_i32_1 = arith.constant 0 : i32
    return %c0_i32, %c0_i32_0 : i32, i32
  }
  func.func @transform_8(%arg0: i32) -> (i32, i32) {
    %c0_i32 = arith.constant 0 : i32
    %c0_i32_0 = arith.constant 0 : i32
    %c0_i32_1 = arith.constant 0 : i32
    return %c0_i32, %c0_i32_0 : i32, i32
  }
  func.func @transform_9(%arg0: i32) -> (i32, i32) {
    %c0_i32 = arith.constant 0 : i32
    %c0_i32_0 = arith.constant 0 : i32
    %c0_i32_1 = arith.constant 0 : i32
    return %c0_i32, %c0_i32_0 : i32, i32
  }
  func.func @transform_10(%arg0: i32) -> (i32, i32) {
    %c0_i32 = arith.constant 0 : i32
    %c0_i32_0 = arith.constant 0 : i32
    %c0_i32_1 = arith.constant 0 : i32
    return %c0_i32, %c0_i32_0 : i32, i32
  }
  func.func @transform_11(%arg0: i32) -> (i32, i32) {
    %c0_i32 = arith.constant 0 : i32
    %c0_i32_0 = arith.constant 0 : i32
    %c0_i32_1 = arith.constant 0 : i32
    return %c0_i32, %c0_i32_0 : i32, i32
  }
  func.func @transform_12(%arg0: i32) -> (i32, i32) {
    %c0_i32 = arith.constant 0 : i32
    %c0_i32_0 = arith.constant 0 : i32
    %c0_i32_1 = arith.constant 0 : i32
    return %c0_i32, %c0_i32_0 : i32, i32
  }
}

</mosaic_0001>

<llo_original>
// kernel: _speller_fused.1
$region0: #{_speller_fused.1}
  #allocation0 [shape = 'u32[]', space=smem, size = 0x4, offset = 0x4, fixed_abs, tag = 'smem constant byte address 0x4 - core index']
  #allocation1 [shape = 'u32[72,128]{1,0:T(1,128)}', space=vmem, size = 0x9000, scoped, tag = 'internal scratch']
  %s0 = inlined_call_operand.vmem [shape: s32[16,1], index: 0, kind: input, shape index: {}]
  %s1 = inlined_call_operand.vmem [shape: f32[32,128], index: 1, kind: input, shape index: {}]
  %s2 = inlined_call_operand.vmem [shape: f32[32,128], index: 2, kind: input, shape index: {}]
  %s3 = inlined_call_operand.vmem [shape: f32[1,128], index: 3, kind: input, shape index: {}]
  %s4 = inlined_call_operand.vmem [shape: f32[2,16,32], index: 4, kind: input, shape index: {}]
  %s5 = inlined_call_operand.vmem [shape: f32[32,32], index: 5, kind: input, shape index: {}]
  %s6 = inlined_call_operand.vmem [shape: f32[1,32], index: 6, kind: input, shape index: {}]
  %s7 = inlined_call_operand.vmem [shape: f32[32,64], index: 7, kind: input, shape index: {}]
  %s8 = inlined_call_operand.vmem [shape: f32[1,64], index: 8, kind: input, shape index: {}]
  %s9 = inlined_call_operand.vmem [shape: f32[32,32], index: 9, kind: input, shape index: {}]
  %s10 = inlined_call_operand.vmem [shape: f32[1,32], index: 10, kind: input, shape index: {}]
  %s11 = inlined_call_operand.vmem [shape: f32[2,256], index: 11, kind: output, shape index: {0}]
  %s12 = inlined_call_operand.vmem [shape: f32[2,256], index: 12, kind: output, shape index: {1}]
  %13 = xla_tuple %s11, %s12
  %s14 = sld [smem:[#allocation0]]
  $region62: #{_speller_fused.1} parent=0
    _
  %s16 = ssub.s32 1, %s14
  %s17 = scalar_select 0, %s16, %s14
  // Predicated region
  $region2: #{_speller_fused.1} parent=0 // pred_check
    _
  $region3: #{_speller_fused.1} parent=0 // pred_check_branch
    %19 = sbr.rel (0) target = $region5
  $region4: #{_speller_fused.1} parent=0 // pred_region
    _
  $region5: #{_speller_fused.1} parent=0 // pred_fallthru
    _
  // Predicated region
  $region6: #{_speller_fused.1} parent=0 // pred_check
    _
  $region7: #{_speller_fused.1} parent=0 // pred_check_branch
    %21 = sbr.rel (0) target = $region9
  $region8: #{_speller_fused.1} parent=0 // pred_region
    _
  $region9: #{_speller_fused.1} parent=0 // pred_fallthru
    _
  // Predicated region
  $region10: #{_speller_fused.1} parent=0 // pred_check
    _
  $region11: #{_speller_fused.1} parent=0 // pred_check_branch
    %23 = sbr.rel (0) target = $region13
  $region12: #{_speller_fused.1} parent=0 // pred_region
    _
  $region13: #{_speller_fused.1} parent=0 // pred_fallthru
    _
  // Predicated region
  $region14: #{_speller_fused.1} parent=0 // pred_check
    _
  $region15: #{_speller_fused.1} parent=0 // pred_check_branch
    %25 = sbr.rel (0) target = $region17
  $region16: #{_speller_fused.1} parent=0 // pred_region
    _
  $region17: #{_speller_fused.1} parent=0 // pred_fallthru
    _
  // Predicated region
  $region18: #{_speller_fused.1} parent=0 // pred_check
    _
  $region19: #{_speller_fused.1} parent=0 // pred_check_branch
    %27 = sbr.rel (0) target = $region21
  $region20: #{_speller_fused.1} parent=0 // pred_region
    _
  $region21: #{_speller_fused.1} parent=0 // pred_fallthru
    _
  // Predicated region
  $region22: #{_speller_fused.1} parent=0 // pred_check
    _
  $region23: #{_speller_fused.1} parent=0 // pred_check_branch
    %29 = sbr.rel (0) target = $region25
  $region24: #{_speller_fused.1} parent=0 // pred_region
    _
  $region25: #{_speller_fused.1} parent=0 // pred_fallthru
    _
  // Predicated region
  $region26: #{_speller_fused.1} parent=0 // pred_check
    _
  $region27: #{_speller_fused.1} parent=0 // pred_check_branch
    %31 = sbr.rel (0) target = $region29
  $region28: #{_speller_fused.1} parent=0 // pred_region
    _
  $region29: #{_speller_fused.1} parent=0 // pred_fallthru
    _
  // Predicated region
  $region30: #{_speller_fused.1} parent=0 // pred_check
    _
  $region31: #{_speller_fused.1} parent=0 // pred_check_branch
    %33 = sbr.rel (0) target = $region33
  $region32: #{_speller_fused.1} parent=0 // pred_region
    _
  $region33: #{_speller_fused.1} parent=0 // pred_fallthru
    _
  // Predicated region
  $region34: #{_speller_fused.1} parent=0 // pred_check
    _
  $region35: #{_speller_fused.1} parent=0 // pred_check_branch
    %35 = sbr.rel (0) target = $region37
  $region36: #{_speller_fused.1} parent=0 // pred_region
    _
  $region37: #{_speller_fused.1} parent=0 // pred_fallthru
    _
  // Predicated region
  $region38: #{_speller_fused.1} parent=0 // pred_check
    _
  $region39: #{_speller_fused.1} parent=0 // pred_check_branch
    %37 = sbr.rel (0) target = $region41
  $region40: #{_speller_fused.1} parent=0 // pred_region
    _
  $region41: #{_speller_fused.1} parent=0 // pred_fallthru
    _
  // Predicated region
  $region42: #{_speller_fused.1} parent=0 // pred_check
    _
  $region43: #{_speller_fused.1} parent=0 // pred_check_branch
    %39 = sbr.rel (0) target = $region45
  $region44: #{_speller_fused.1} parent=0 // pred_region
    _
  $region45: #{_speller_fused.1} parent=0 // pred_fallthru
    _
  %v40 = vlaneseq
  %v41 = vand.u32 %v40, 127
  %v42 = vld [vmem:[%s0] sm:$0xff]
  %v43 = vld [vmem:[%s0 + $0x8] sm:$0xff]
  %44 = vset.pattern.permute.xlu0 0
  %45 = vperm.xlu0 %44, %v42
  %v46 = vpop.permute.xlu0 %45
  %47 = vset.pattern.permute.xlu0 0
  %48 = vperm.xlu0 %47, %v43
  %v49 = vpop.permute.xlu0 %48
  %vm50 = vcmp.eq.s32.totalorder %v46, %v41
  %vm51 = vcmp.eq.s32.totalorder %v49, %v41
  %v52 = vsel %vm50, 1, 0
  %v53 = vsel %vm51, 1, 0
  %v54 = vcvt.s32.f32 %v52
  %v55 = vcvt.s32.f32 %v53
  %v56 = vld [vmem:[%s1] sm:$0xff]
  %v57 = vld [vmem:[%s1 + $0x8] sm:$0xff]
  %v58 = vld [vmem:[%s1 + $0x10] sm:$0xff]
  %v59 = vld [vmem:[%s1 + $0x18] sm:$0xff]
  %v60 = vld [vmem:[%s3] sm:$0x1]
  %v62 = vperm.slane %v60, 0
  %vm64 = vcmask 261120
  %v66 = vsel %vm64, %v54, 0
  %v69 = vsel %vm64, %v55, 0
  %71 = vmatpush.msra.mxu0 0.0
  %72 = vmatpush.msra.mxu0 0.0
  %73 = vmatpush.msra.mxu0 0.0
  %74 = vmatpush.msra.mxu0 0.0
  %75 = vmatpush.msra.mxu0 0.0
  %76 = vmatpush.msra.mxu0 0.0
  %77 = vmatpush.msra.mxu0 0.0
  %78 = vmatpush.msra.mxu0 0.0
  %79 = vmatpush.msra.mxu0 0.0
  %80 = vmatpush.msra.mxu0 0.0
  %81 = vmatpush.msra.mxu0 0.0
  %82 = vmatpush.msra.mxu0 0.0
  %83 = vmatpush.msra.mxu0 %v59
  %84 = vmatpush.msra.mxu0 %v58
  %85 = vmatpush.msra.mxu0 %v57
  %86 = vmatpush.msra.mxu0 %v56
  %87 = vmatmul.f32.gmra.mxu0 %v66
  %v88 = vpop.f32.mrf.mxu0
  %v89 = vadd.f32 %v62, %v88
  %90 = vmatmul.f32.gmra.mxu0 %v69
  %v91 = vpop.f32.mrf.mxu0
  %v92 = vadd.f32 %v62, %v91
  %93 = vdwg.mxu0
  %v94 = vld [vmem:[%s2] sm:$0xff]
  %v95 = vld [vmem:[%s2 + $0x8] sm:$0xff]
  %v96 = vld [vmem:[%s2 + $0x10] sm:$0xff]
  %v97 = vld [vmem:[%s2 + $0x18] sm:$0xff]
  %v99 = vsel %vm64, 0.0, 0
  %101 = vmatpush.msra.mxu0 0.0
  %102 = vmatpush.msra.mxu0 0.0
  %103 = vmatpush.msra.mxu0 0.0
  %104 = vmatpush.msra.mxu0 0.0
  %105 = vmatpush.msra.mxu0 0.0
  %106 = vmatpush.msra.mxu0 0.0
  %107 = vmatpush.msra.mxu0 0.0
  %108 = vmatpush.msra.mxu0 0.0
  %109 = vmatpush.msra.mxu0 0.0
  %110 = vmatpush.msra.mxu0 0.0
  %111 = vmatpush.msra.mxu0 0.0
  %112 = vmatpush.msra.mxu0 0.0
  %113 = vmatpush.msra.mxu0 %v97
  %114 = vmatpush.msra.mxu0 %v96
  %115 = vmatpush.msra.mxu0 %v95
  %116 = vmatpush.msra.mxu0 %v94
  %117 = vmatmul.f32.gmra.mxu0 %v99
  %v118 = vpop.f32.mrf.mxu0
  %v119 = vadd.f32 0.0, %v118
  %120 = vdwg.mxu0
  %v121 = vadd.f32 %v89, %v119
  %v122 = vxor.u32 %v121, 2147483648
  %v123 = vmul.f32 %v122, 1.442695
  %v124 = vpow.pop %v123
  %v125 = vadd.f32 %v124, 1.0
  %v126 = vrcp.pop %v125
  %v127 = vmul.f32 %v125, %v126
  %v128 = vsub.f32 1.0, %v127
  %v129 = vmul.f32 %v126, %v128
  %v130 = vadd.f32 %v126, %v129
  %vm131 = vweird.f32 %v125
  %vm132 = vweird.f32 %v126
  %vm133 = vmor %vm131, %vm132
  %v134 = vsel %vm133, %v126, %v130
  %v135 = vand.u32 2147483647, %v125
  %vm136 = vcmp.eq.f32.partialorder %v135, 8.507059e+37
  %v137 = vand.u32 %v125, 2147483648
  %v138 = vor.u32 1.1754944e-38, %v137
  %v139 = vsel %vm136, %v138, %v134
  %v140 = vmul.f32 1.0, %v139
  %v141 = vtanh.pop %v121
  %v142 = vmul.f32 %v140, 0.0
  %144 = vrot.lane.b32.xlu0 %v141, 32
  %v145 = vpop.permute.xlu0 %144
  %v147 = vmul.f32 %v140, %v145
  %149 = vrot.lane.b32.xlu0 %v147, 32
  %v150 = vpop.permute.xlu0 %149
  %v152 = vadd.f32 %v142, %v150
  %v153 = vtanh.pop %v152
  %155 = vrot.lane.b32.xlu0 %v153, 32
  %v156 = vpop.permute.xlu0 %155
  %v158 = vmul.f32 %v140, %v156
  %160 = vrot.lane.b32.xlu0 %v158, 64
  %v161 = vpop.permute.xlu0 %160
  %v162 = vsel %vm64, %v161, 0
  %164 = vmatpush.msra.mxu0 0.0
  %165 = vmatpush.msra.mxu0 0.0
  %166 = vmatpush.msra.mxu0 0.0
  %167 = vmatpush.msra.mxu0 0.0
  %168 = vmatpush.msra.mxu0 0.0
  %169 = vmatpush.msra.mxu0 0.0
  %170 = vmatpush.msra.mxu0 0.0
  %171 = vmatpush.msra.mxu0 0.0
  %172 = vmatpush.msra.mxu0 0.0
  %173 = vmatpush.msra.mxu0 0.0
  %174 = vmatpush.msra.mxu0 0.0
  %175 = vmatpush.msra.mxu0 0.0
  %176 = vmatpush.msra.mxu0 %v97
  %177 = vmatpush.msra.mxu0 %v96
  %178 = vmatpush.msra.mxu0 %v95
  %179 = vmatpush.msra.mxu0 %v94
  %180 = vmatmul.f32.gmra.mxu0 %v162
  %v181 = vpop.f32.mrf.mxu0
  %v182 = vadd.f32 0.0, %v181
  %183 = vdwg.mxu0
  %v185 = vrot.slane %v182, 6
  %v187 = vadd.f32 %v89, %v185
  %v188 = vxor.u32 %v187, 2147483648
  %v189 = vmul.f32 %v188, 1.442695
  %v190 = vpow.pop %v189
  %v191 = vadd.f32 %v190, 1.0
  %v192 = vrcp.pop %v191
  %v193 = vmul.f32 %v191, %v192
  %v194 = vsub.f32 1.0, %v193
  %v195 = vmul.f32 %v192, %v194
  %v196 = vadd.f32 %v192, %v195
  %vm197 = vweird.f32 %v191
  %vm198 = vweird.f32 %v192
  %vm199 = vmor %vm197, %vm198
  %v200 = vsel %vm199, %v192, %v196
  %v201 = vand.u32 2147483647, %v191
  %vm202 = vcmp.eq.f32.partialorder %v201, 8.507059e+37
  %v203 = vand.u32 %v191, 2147483648
  %v204 = vor.u32 1.1754944e-38, %v203
  %v205 = vsel %vm202, %v204, %v200
  %v206 = vmul.f32 1.0, %v205
  %v207 = vtanh.pop %v187
  %v209 = vrot.slane %v152, 6
  %v211 = vmul.f32 %v206, %v209
  %213 = vrot.lane.b32.xlu0 %v207, 32
  %v214 = vpop.permute.xlu0 %213
  %v216 = vmul.f32 %v206, %v214
  %218 = vrot.lane.b32.xlu0 %v216, 32
  %v219 = vpop.permute.xlu0 %218
  %v221 = vadd.f32 %v211, %v219
  %v222 = vtanh.pop %v221
  %224 = vrot.lane.b32.xlu0 %v222, 32
  %v225 = vpop.permute.xlu0 %224
  %v227 = vmul.f32 %v206, %v225
  %v229 = vrot.slane %v227, 2
  %230 = vrot.lane.b32.xlu0 %v229, 64
  %v231 = vpop.permute.xlu0 %230
  %v232 = vsel %vm64, %v231, 0
  %234 = vmatpush.msra.mxu0 0.0
  %235 = vmatpush.msra.mxu0 0.0
  %236 = vmatpush.msra.mxu0 0.0
  %237 = vmatpush.msra.mxu0 0.0
  %238 = vmatpush.msra.mxu0 0.0
  %239 = vmatpush.msra.mxu0 0.0
  %240 = vmatpush.msra.mxu0 0.0
  %241 = vmatpush.msra.mxu0 0.0
  %242 = vmatpush.msra.mxu0 0.0
  %243 = vmatpush.msra.mxu0 0.0
  %244 = vmatpush.msra.mxu0 0.0
  %245 = vmatpush.msra.mxu0 0.0
  %246 = vmatpush.msra.mxu0 %v97
  %247 = vmatpush.msra.mxu0 %v96
  %248 = vmatpush.msra.mxu0 %v95
  %249 = vmatpush.msra.mxu0 %v94
  %250 = vmatmul.f32.gmra.mxu0 %v232
  %v251 = vpop.f32.mrf.mxu0
  %v252 = vadd.f32 0.0, %v251
  %253 = vdwg.mxu0
  %v255 = vrot.slane %v252, 4
  %v257 = vadd.f32 %v89, %v255
  %v258 = vxor.u32 %v257, 2147483648
  %v259 = vmul.f32 %v258, 1.442695
  %v260 = vpow.pop %v259
  %v261 = vadd.f32 %v260, 1.0
  %v262 = vrcp.pop %v261
  %v263 = vmul.f32 %v261, %v262
  %v264 = vsub.f32 1.0, %v263
  %v265 = vmul.f32 %v262, %v264
  %v266 = vadd.f32 %v262, %v265
  %vm267 = vweird.f32 %v261
  %vm268 = vweird.f32 %v262
  %vm269 = vmor %vm267, %vm268
  %v270 = vsel %vm269, %v262, %v266
  %v271 = vand.u32 2147483647, %v261
  %vm272 = vcmp.eq.f32.partialorder %v271, 8.507059e+37
  %v273 = vand.u32 %v261, 2147483648
  %v274 = vor.u32 1.1754944e-38, %v273
  %v275 = vsel %vm272, %v274, %v270
  %v276 = vmul.f32 1.0, %v275
  %v277 = vtanh.pop %v257
  %v279 = vrot.slane %v221, 6
  %v281 = vmul.f32 %v276, %v279
  %283 = vrot.lane.b32.xlu0 %v277, 32
  %v284 = vpop.permute.xlu0 %283
  %v286 = vmul.f32 %v276, %v284
  %288 = vrot.lane.b32.xlu0 %v286, 32
  %v289 = vpop.permute.xlu0 %288
  %v291 = vadd.f32 %v281, %v289
  %v292 = vtanh.pop %v291
  %294 = vrot.lane.b32.xlu0 %v292, 32
  %v295 = vpop.permute.xlu0 %294
  %v297 = vmul.f32 %v276, %v295
  %v299 = vrot.slane %v297, 4
  %300 = vrot.lane.b32.xlu0 %v299, 64
  %v301 = vpop.permute.xlu0 %300
  %v302 = vsel %vm64, %v301, 0
  %304 = vmatpush.msra.mxu0 0.0
  %305 = vmatpush.msra.mxu0 0.0
  %306 = vmatpush.msra.mxu0 0.0
  %307 = vmatpush.msra.mxu0 0.0
  %308 = vmatpush.msra.mxu0 0.0
  %309 = vmatpush.msra.mxu0 0.0
  %310 = vmatpush.msra.mxu0 0.0
  %311 = vmatpush.msra.mxu0 0.0
  %312 = vmatpush.msra.mxu0 0.0
  %313 = vmatpush.msra.mxu0 0.0
  %314 = vmatpush.msra.mxu0 0.0
  %315 = vmatpush.msra.mxu0 0.0
  %316 = vmatpush.msra.mxu0 %v97
  %317 = vmatpush.msra.mxu0 %v96
  %318 = vmatpush.msra.mxu0 %v95
  %319 = vmatpush.msra.mxu0 %v94
  %320 = vmatmul.f32.gmra.mxu0 %v302
  %v321 = vpop.f32.mrf.mxu0
  %v322 = vadd.f32 0.0, %v321
  %323 = vdwg.mxu0
  %v325 = vrot.slane %v322, 2
  %v327 = vadd.f32 %v89, %v325
  %v328 = vxor.u32 %v327, 2147483648
  %v329 = vmul.f32 %v328, 1.442695
  %v330 = vpow.pop %v329
  %v331 = vadd.f32 %v330, 1.0
  %v332 = vrcp.pop %v331
  %v333 = vmul.f32 %v331, %v332
  %v334 = vsub.f32 1.0, %v333
  %v335 = vmul.f32 %v332, %v334
  %v336 = vadd.f32 %v332, %v335
  %vm337 = vweird.f32 %v331
  %vm338 = vweird.f32 %v332
  %vm339 = vmor %vm337, %vm338
  %v340 = vsel %vm339, %v332, %v336
  %v341 = vand.u32 2147483647, %v331
  %vm342 = vcmp.eq.f32.partialorder %v341, 8.507059e+37
  %v343 = vand.u32 %v331, 2147483648
  %v344 = vor.u32 1.1754944e-38, %v343
  %v345 = vsel %vm342, %v344, %v340
  %v346 = vmul.f32 1.0, %v345
  %v347 = vtanh.pop %v327
  %v349 = vrot.slane %v291, 6
  %v351 = vmul.f32 %v346, %v349
  %353 = vrot.lane.b32.xlu0 %v347, 32
  %v354 = vpop.permute.xlu0 %353
  %v356 = vmul.f32 %v346, %v354
  %358 = vrot.lane.b32.xlu0 %v356, 32
  %v359 = vpop.permute.xlu0 %358
  %v361 = vadd.f32 %v351, %v359
  %v362 = vtanh.pop %v361
  %364 = vrot.lane.b32.xlu0 %v362, 32
  %v365 = vpop.permute.xlu0 %364
  %v367 = vmul.f32 %v346, %v365
  %v369 = vrot.slane %v367, 6
  %370 = vrot.lane.b32.xlu0 %v369, 64
  %v371 = vpop.permute.xlu0 %370
  %v372 = vsel %vm64, %v371, 0
  %374 = vmatpush.msra.mxu0 0.0
  %375 = vmatpush.msra.mxu0 0.0
  %376 = vmatpush.msra.mxu0 0.0
  %377 = vmatpush.msra.mxu0 0.0
  %378 = vmatpush.msra.mxu0 0.0
  %379 = vmatpush.msra.mxu0 0.0
  %380 = vmatpush.msra.mxu0 0.0
  %381 = vmatpush.msra.mxu0 0.0
  %382 = vmatpush.msra.mxu0 0.0
  %383 = vmatpush.msra.mxu0 0.0
  %384 = vmatpush.msra.mxu0 0.0
  %385 = vmatpush.msra.mxu0 0.0
  %386 = vmatpush.msra.mxu0 %v97
  %387 = vmatpush.msra.mxu0 %v96
  %388 = vmatpush.msra.mxu0 %v95
  %389 = vmatpush.msra.mxu0 %v94
  %390 = vmatmul.f32.gmra.mxu0 %v372
  %v391 = vpop.f32.mrf.mxu0
  %v392 = vadd.f32 0.0, %v391
  %393 = vdwg.mxu0
  %v394 = vadd.f32 %v92, %v392
  %v395 = vxor.u32 %v394, 2147483648
  %v396 = vmul.f32 %v395, 1.442695
  %v397 = vpow.pop %v396
  %v398 = vadd.f32 %v397, 1.0
  %v399 = vrcp.pop %v398
  %v400 = vmul.f32 %v398, %v399
  %v401 = vsub.f32 1.0, %v400
  %v402 = vmul.f32 %v399, %v401
  %v403 = vadd.f32 %v399, %v402
  %vm404 = vweird.f32 %v398
  %vm405 = vweird.f32 %v399
  %vm406 = vmor %vm404, %vm405
  %v407 = vsel %vm406, %v399, %v403
  %v408 = vand.u32 2147483647, %v398
  %vm409 = vcmp.eq.f32.partialorder %v408, 8.507059e+37
  %v410 = vand.u32 %v398, 2147483648
  %v411 = vor.u32 1.1754944e-38, %v410
  %v412 = vsel %vm409, %v411, %v407
  %v413 = vmul.f32 1.0, %v412
  %v414 = vtanh.pop %v394
  %v416 = vrot.slane %v361, 6
  %v418 = vmul.f32 %v413, %v416
  %420 = vrot.lane.b32.xlu0 %v414, 32
  %v421 = vpop.permute.xlu0 %420
  %v423 = vmul.f32 %v413, %v421
  %425 = vrot.lane.b32.xlu0 %v423, 32
  %v426 = vpop.permute.xlu0 %425
  %v428 = vadd.f32 %v418, %v426
  %v429 = vtanh.pop %v428
  %431 = vrot.lane.b32.xlu0 %v429, 32
  %v432 = vpop.permute.xlu0 %431
  %v434 = vmul.f32 %v413, %v432
  %436 = vrot.lane.b32.xlu0 %v434, 64
  %v437 = vpop.permute.xlu0 %436
  %v438 = vsel %vm64, %v437, 0
  %440 = vmatpush.msra.mxu0 0.0
  %441 = vmatpush.msra.mxu0 0.0
  %442 = vmatpush.msra.mxu0 0.0
  %443 = vmatpush.msra.mxu0 0.0
  %444 = vmatpush.msra.mxu0 0.0
  %445 = vmatpush.msra.mxu0 0.0
  %446 = vmatpush.msra.mxu0 0.0
  %447 = vmatpush.msra.mxu0 0.0
  %448 = vmatpush.msra.mxu0 0.0
  %449 = vmatpush.msra.mxu0 0.0
  %450 = vmatpush.msra.mxu0 0.0
  %451 = vmatpush.msra.mxu0 0.0
  %452 = vmatpush.msra.mxu0 %v97
  %453 = vmatpush.msra.mxu0 %v96
  %454 = vmatpush.msra.mxu0 %v95
  %455 = vmatpush.msra.mxu0 %v94
  %456 = vmatmul.f32.gmra.mxu0 %v438
  %v457 = vpop.f32.mrf.mxu0
  %v458 = vadd.f32 0.0, %v457
  %459 = vdwg.mxu0
  %v461 = vrot.slane %v458, 6
  %v463 = vadd.f32 %v92, %v461
  %v464 = vxor.u32 %v463, 2147483648
  %v465 = vmul.f32 %v464, 1.442695
  %v466 = vpow.pop %v465
  %v467 = vadd.f32 %v466, 1.0
  %v468 = vrcp.pop %v467
  %v469 = vmul.f32 %v467, %v468
  %v470 = vsub.f32 1.0, %v469
  %v471 = vmul.f32 %v468, %v470
  %v472 = vadd.f32 %v468, %v471
  %vm473 = vweird.f32 %v467
  %vm474 = vweird.f32 %v468
  %vm475 = vmor %vm473, %vm474
  %v476 = vsel %vm475, %v468, %v472
  %v477 = vand.u32 2147483647, %v467
  %vm478 = vcmp.eq.f32.partialorder %v477, 8.507059e+37
  %v479 = vand.u32 %v467, 2147483648
  %v480 = vor.u32 1.1754944e-38, %v479
  %v481 = vsel %vm478, %v480, %v476
  %v482 = vmul.f32 1.0, %v481
  %v483 = vtanh.pop %v463
  %v485 = vrot.slane %v428, 6
  %v487 = vmul.f32 %v482, %v485
  %489 = vrot.lane.b32.xlu0 %v483, 32
  %v490 = vpop.permute.xlu0 %489
  %v492 = vmul.f32 %v482, %v490
  %494 = vrot.lane.b32.xlu0 %v492, 32
  %v495 = vpop.permute.xlu0 %494
  %v497 = vadd.f32 %v487, %v495
  %v498 = vtanh.pop %v497
  %500 = vrot.lane.b32.xlu0 %v498, 32
  %v501 = vpop.permute.xlu0 %500
  %v503 = vmul.f32 %v482, %v501
  %v505 = vrot.slane %v503, 2
  %506 = vrot.lane.b32.xlu0 %v505, 64
  %v507 = vpop.permute.xlu0 %506
  %v508 = vsel %vm64, %v507, 0
  %510 = vmatpush.msra.mxu0 0.0
  %511 = vmatpush.msra.mxu0 0.0
  %512 = vmatpush.msra.mxu0 0.0
  %513 = vmatpush.msra.mxu0 0.0
  %514 = vmatpush.msra.mxu0 0.0
  %515 = vmatpush.msra.mxu0 0.0
  %516 = vmatpush.msra.mxu0 0.0
  %517 = vmatpush.msra.mxu0 0.0
  %518 = vmatpush.msra.mxu0 0.0
  %519 = vmatpush.msra.mxu0 0.0
  %520 = vmatpush.msra.mxu0 0.0
  %521 = vmatpush.msra.mxu0 0.0
  %522 = vmatpush.msra.mxu0 %v97
  %523 = vmatpush.msra.mxu0 %v96
  %524 = vmatpush.msra.mxu0 %v95
  %525 = vmatpush.msra.mxu0 %v94
  %526 = vmatmul.f32.gmra.mxu0 %v508
  %v527 = vpop.f32.mrf.mxu0
  %v528 = vadd.f32 0.0, %v527
  %529 = vdwg.mxu0
  %v531 = vrot.slane %v528, 4
  %v533 = vadd.f32 %v92, %v531
  %v534 = vxor.u32 %v533, 2147483648
  %v535 = vmul.f32 %v534, 1.442695
  %v536 = vpow.pop %v535
  %v537 = vadd.f32 %v536, 1.0
  %v538 = vrcp.pop %v537
  %v539 = vmul.f32 %v537, %v538
  %v540 = vsub.f32 1.0, %v539
  %v541 = vmul.f32 %v538, %v540
  %v542 = vadd.f32 %v538, %v541
  %vm543 = vweird.f32 %v537
  %vm544 = vweird.f32 %v538
  %vm545 = vmor %vm543, %vm544
  %v546 = vsel %vm545, %v538, %v542
  %v547 = vand.u32 2147483647, %v537
  %vm548 = vcmp.eq.f32.partialorder %v547, 8.507059e+37
  %v549 = vand.u32 %v537, 2147483648
  %v550 = vor.u32 1.1754944e-38, %v549
  %v551 = vsel %vm548, %v550, %v546
  %v552 = vmul.f32 1.0, %v551
  %v553 = vtanh.pop %v533
  %v555 = vrot.slane %v497, 6
  %v557 = vmul.f32 %v552, %v555
  %559 = vrot.lane.b32.xlu0 %v553, 32
  %v560 = vpop.permute.xlu0 %559
  %v562 = vmul.f32 %v552, %v560
  %564 = vrot.lane.b32.xlu0 %v562, 32
  %v565 = vpop.permute.xlu0 %564
  %v567 = vadd.f32 %v557, %v565
  %v568 = vtanh.pop %v567
  %570 = vrot.lane.b32.xlu0 %v568, 32
  %v571 = vpop.permute.xlu0 %570
  %v573 = vmul.f32 %v552, %v571
  %v575 = vrot.slane %v573, 4
  %576 = vrot.lane.b32.xlu0 %v575, 64
  %v577 = vpop.permute.xlu0 %576
  %v578 = vsel %vm64, %v577, 0
  %580 = vmatpush.msra.mxu0 0.0
  %581 = vmatpush.msra.mxu0 0.0
  %582 = vmatpush.msra.mxu0 0.0
  %583 = vmatpush.msra.mxu0 0.0
  %584 = vmatpush.msra.mxu0 0.0
  %585 = vmatpush.msra.mxu0 0.0
  %586 = vmatpush.msra.mxu0 0.0
  %587 = vmatpush.msra.mxu0 0.0
  %588 = vmatpush.msra.mxu0 0.0
  %589 = vmatpush.msra.mxu0 0.0
  %590 = vmatpush.msra.mxu0 0.0
  %591 = vmatpush.msra.mxu0 0.0
  %592 = vmatpush.msra.mxu0 %v97
  %593 = vmatpush.msra.mxu0 %v96
  %594 = vmatpush.msra.mxu0 %v95
  %595 = vmatpush.msra.mxu0 %v94
  %596 = vmatmul.f32.gmra.mxu0 %v578
  %v597 = vpop.f32.mrf.mxu0
  %v598 = vadd.f32 0.0, %v597
  %599 = vdwg.mxu0
  %v601 = vrot.slane %v598, 2
  %v603 = vadd.f32 %v92, %v601
  %v604 = vxor.u32 %v603, 2147483648
  %v605 = vmul.f32 %v604, 1.442695
  %v606 = vpow.pop %v605
  %v607 = vadd.f32 %v606, 1.0
  %v608 = vrcp.pop %v607
  %v609 = vmul.f32 %v607, %v608
  %v610 = vsub.f32 1.0, %v609
  %v611 = vmul.f32 %v608, %v610
  %v612 = vadd.f32 %v608, %v611
  %vm613 = vweird.f32 %v607
  %vm614 = vweird.f32 %v608
  %vm615 = vmor %vm613, %vm614
  %v616 = vsel %vm615, %v608, %v612
  %v617 = vand.u32 2147483647, %v607
  %vm618 = vcmp.eq.f32.partialorder %v617, 8.507059e+37
  %v619 = vand.u32 %v607, 2147483648
  %v620 = vor.u32 1.1754944e-38, %v619
  %v621 = vsel %vm618, %v620, %v616
  %v622 = vmul.f32 1.0, %v621
  %v623 = vtanh.pop %v603
  %v625 = vrot.slane %v567, 6
  %v627 = vmul.f32 %v622, %v625
  %629 = vrot.lane.b32.xlu0 %v623, 32
  %v630 = vpop.permute.xlu0 %629
  %v632 = vmul.f32 %v622, %v630
  %634 = vrot.lane.b32.xlu0 %v632, 32
  %v635 = vpop.permute.xlu0 %634
  %v637 = vadd.f32 %v627, %v635
  %v638 = vtanh.pop %v637
  %640 = vrot.lane.b32.xlu0 %v638, 32
  %v641 = vpop.permute.xlu0 %640
  %v643 = vmul.f32 %v622, %v641
  %v644 = vrot.slane %v227, 1
  %v646 = vrot.slane %v297, 2
  %v648 = vrot.slane %v367, 3
  %v650 = vrot.slane %v434, 4
  %v652 = vrot.slane %v503, 5
  %v654 = vrot.slane %v573, 6
  %v657 = vrot.slane %v643, 7
  %vm659 = vcmask 1040384
  %v660 = vsel %vm659, %v158, %v644
  %vm661 = vcmask 1041408
  %v662 = vsel %vm661, %v660, %v646
  %vm663 = vcmask 1042432
  %v664 = vsel %vm663, %v662, %v648
  %vm665 = vcmask 1043456
  %v666 = vsel %vm665, %v664, %v650
  %vm667 = vcmask 1044480
  %v668 = vsel %vm667, %v666, %v652
  %vm669 = vcmask 1045504
  %v670 = vsel %vm669, %v668, %v654
  %vm671 = vcmask 1046528
  %v672 = vsel %vm671, %v670, %v657
  %v673 = vrot.slane %v158, 1
  %v676 = vrot.slane %v297, 3
  %v678 = vrot.slane %v367, 4
  %v680 = vrot.slane %v434, 5
  %v682 = vrot.slane %v503, 6
  %v684 = vrot.slane %v573, 7
  %v686 = vsel %vm659, %v673, %v229
  %v687 = vsel %vm661, %v686, %v676
  %v688 = vsel %vm663, %v687, %v678
  %v689 = vsel %vm665, %v688, %v680
  %v690 = vsel %vm667, %v689, %v682
  %v691 = vsel %vm669, %v690, %v684
  %v692 = vsel %vm671, %v691, %v643
  %v693 = vld [vmem:[%s5] sm:$0xff]
  %v694 = vld [vmem:[%s5 + $0x8] sm:$0xff]
  %v695 = vld [vmem:[%s5 + $0x10] sm:$0xff]
  %v696 = vld [vmem:[%s5 + $0x18] sm:$0xff]
  %v697 = vld [vmem:[%s6] sm:$0x1]
  %v699 = vperm.slane %v697, 0
  %703 = vrot.lane.b32.xlu0 %v672, 64
  %v704 = vpop.permute.xlu0 %703
  %705 = vrot.lane.b32.xlu0 %v692, 64
  %v706 = vpop.permute.xlu0 %705
  %v707 = vsel %vm64, %v704, 0
  %v709 = vsel %vm64, %v706, 0
  %711 = vmatpush.msra.mxu0 0.0
  %712 = vmatpush.msra.mxu0 0.0
  %713 = vmatpush.msra.mxu0 0.0
  %714 = vmatpush.msra.mxu0 0.0
  %715 = vmatpush.msra.mxu0 0.0
  %716 = vmatpush.msra.mxu0 0.0
  %717 = vmatpush.msra.mxu0 0.0
  %718 = vmatpush.msra.mxu0 0.0
  %719 = vmatpush.msra.mxu0 0.0
  %720 = vmatpush.msra.mxu0 0.0
  %721 = vmatpush.msra.mxu0 0.0
  %722 = vmatpush.msra.mxu0 0.0
  %723 = vmatpush.msra.mxu0 %v696
  %724 = vmatpush.msra.mxu0 %v695
  %725 = vmatpush.msra.mxu0 %v694
  %726 = vmatpush.msra.mxu0 %v693
  %727 = vmatmul.f32.gmra.mxu0 %v707
  %v728 = vpop.f32.mrf.mxu0
  %v729 = vadd.f32 %v699, %v728
  %730 = vmatmul.f32.gmra.mxu0 %v709
  %v731 = vpop.f32.mrf.mxu0
  %v732 = vadd.f32 %v699, %v731
  %733 = vdwg.mxu0
  %v734 = vld [vmem:[%s4] sm:$0xff]
  %v735 = vld [vmem:[%s4 + $0x8] sm:$0xff]
  %v736 = vld [vmem:[%s4 + $0x10] sm:$0xff]
  %v737 = vld [vmem:[%s4 + $0x18] sm:$0xff]
  %v738 = vld [vmem:[%s7] sm:$0xff]
  %v739 = vld [vmem:[%s7 + $0x8] sm:$0xff]
  %v740 = vld [vmem:[%s7 + $0x10] sm:$0xff]
  %v741 = vld [vmem:[%s7 + $0x18] sm:$0xff]
  %v742 = vld [vmem:[%s8] sm:$0x1]
  %v744 = vperm.slane %v742, 0
  %v747 = vsel %vm64, %v734, 0
  %v750 = vsel %vm64, %v735, 0
  %v753 = vsel %vm64, %v736, 0
  %v756 = vsel %vm64, %v737, 0
  %758 = vmatpush.msra.mxu0 0.0
  %759 = vmatpush.msra.mxu0 0.0
  %760 = vmatpush.msra.mxu0 0.0
  %761 = vmatpush.msra.mxu0 0.0
  %762 = vmatpush.msra.mxu0 0.0
  %763 = vmatpush.msra.mxu0 0.0
  %764 = vmatpush.msra.mxu0 0.0
  %765 = vmatpush.msra.mxu0 0.0
  %766 = vmatpush.msra.mxu0 0.0
  %767 = vmatpush.msra.mxu0 0.0
  %768 = vmatpush.msra.mxu0 0.0
  %769 = vmatpush.msra.mxu0 0.0
  %770 = vmatpush.msra.mxu0 %v741
  %771 = vmatpush.msra.mxu0 %v740
  %772 = vmatpush.msra.mxu0 %v739
  %773 = vmatpush.msra.mxu0 %v738
  %774 = vmatmul.f32.gmra.mxu0 %v747
  %v775 = vpop.f32.mrf.mxu0
  %v776 = vadd.f32 %v744, %v775
  %777 = vmatmul.f32.gmra.mxu0 %v750
  %v778 = vpop.f32.mrf.mxu0
  %v779 = vadd.f32 %v744, %v778
  %780 = vmatmul.f32.gmra.mxu0 %v753
  %v781 = vpop.f32.mrf.mxu0
  %v782 = vadd.f32 %v744, %v781
  %783 = vmatmul.f32.gmra.mxu0 %v756
  %v784 = vpop.f32.mrf.mxu0
  %v785 = vadd.f32 %v744, %v784
  %786 = vdwg.mxu0
  %v787 = vmul.f32 %v729, 0.35355338
  %v788 = vmul.f32 %v732, 0.35355338
  %vm789 = vcmask 64512
  %v791 = vsel %vm789, %v787, 0
  %v794 = vsel %vm789, %v776, 0
  %v797 = vsel %vm789, %v779, 0
  %799 = vmatpush.xpose.msra.mxu0 0.0
  %800 = vmatpush.xpose.msra.mxu0 0.0
  %801 = vmatpush.xpose.msra.mxu0 0.0
  %802 = vmatpush.xpose.msra.mxu0 0.0
  %803 = vmatpush.xpose.msra.mxu0 0.0
  %804 = vmatpush.xpose.msra.mxu0 0.0
  %805 = vmatpush.xpose.msra.mxu0 0.0
  %806 = vmatpush.xpose.msra.mxu0 0.0
  %807 = vmatpush.xpose.msra.mxu0 0.0
  %808 = vmatpush.xpose.msra.mxu0 0.0
  %809 = vmatpush.xpose.msra.mxu0 0.0
  %810 = vmatpush.xpose.msra.mxu0 0.0
  %811 = vmatpush.xpose.msra.mxu0 0.0
  %812 = vmatpush.xpose.msra.mxu0 0.0
  %813 = vmatpush.xpose.msra.mxu0 %v797
  %814 = vmatpush.xpose.msra.mxu0 %v794
  %815 = vmatmul.f32.gmra.mxu0 %v791
  %v816 = vpop.f32.mrf.mxu0
  %v817 = vadd.f32 0.0, %v816
  %818 = vdwg.mxu0
  %v820 = vsel %vm789, %v788, 0
  %v823 = vsel %vm789, %v782, 0
  %v826 = vsel %vm789, %v785, 0
  %828 = vmatpush.xpose.msra.mxu0 0.0
  %829 = vmatpush.xpose.msra.mxu0 0.0
  %830 = vmatpush.xpose.msra.mxu0 0.0
  %831 = vmatpush.xpose.msra.mxu0 0.0
  %832 = vmatpush.xpose.msra.mxu0 0.0
  %833 = vmatpush.xpose.msra.mxu0 0.0
  %834 = vmatpush.xpose.msra.mxu0 0.0
  %835 = vmatpush.xpose.msra.mxu0 0.0
  %836 = vmatpush.xpose.msra.mxu0 0.0
  %837 = vmatpush.xpose.msra.mxu0 0.0
  %838 = vmatpush.xpose.msra.mxu0 0.0
  %839 = vmatpush.xpose.msra.mxu0 0.0
  %840 = vmatpush.xpose.msra.mxu0 0.0
  %841 = vmatpush.xpose.msra.mxu0 0.0
  %842 = vmatpush.xpose.msra.mxu0 %v826
  %843 = vmatpush.xpose.msra.mxu0 %v823
  %844 = vmatmul.f32.gmra.mxu0 %v820
  %v845 = vpop.f32.mrf.mxu0
  %v846 = vadd.f32 0.0, %v845
  %847 = vdwg.mxu0
  %vm848 = vcmask 130048
  %v849 = vsel %vm848, %v817, -inf
  %850 = vmax.xlane.f32.xlu0 %v849
  %v851 = vpop.xlane.xlu0 %850
  %v852 = vsel %vm848, %v846, -inf
  %853 = vmax.xlane.f32.xlu0 %v852
  %v854 = vpop.xlane.xlu0 %853
  %v855 = vsub.f32 %v817, %v851
  %v856 = vsub.f32 %v846, %v854
  %v857 = vmul.f32 %v855, 1.442695
  %v858 = vpow.pop %v857
  %v859 = vmul.f32 %v856, 1.442695
  %v860 = vpow.pop %v859
  %v861 = vsel %vm848, %v858, 0.0
  %862 = vadd.xlane.f32.xlu0 %v861
  %v863 = vpop.xlane.xlu0 %862
  %v864 = vsel %vm848, %v860, 0.0
  %865 = vadd.xlane.f32.xlu0 %v864
  %v866 = vpop.xlane.xlu0 %865
  %v867 = vrcp.pop %v863
  %v868 = vmul.f32 %v863, %v867
  %v869 = vsub.f32 1.0, %v868
  %v870 = vmul.f32 %v867, %v869
  %v871 = vadd.f32 %v867, %v870
  %vm872 = vweird.f32 %v863
  %vm873 = vweird.f32 %v867
  %vm874 = vmor %vm872, %vm873
  %v875 = vsel %vm874, %v867, %v871
  %v876 = vand.u32 2147483647, %v863
  %vm877 = vcmp.eq.f32.partialorder %v876, 8.507059e+37
  %v878 = vand.u32 %v863, 2147483648
  %v879 = vor.u32 1.1754944e-38, %v878
  %v880 = vsel %vm877, %v879, %v875
  %v881 = vmul.f32 %v858, %v880
  %v882 = vrcp.pop %v866
  %v883 = vmul.f32 %v866, %v882
  %v884 = vsub.f32 1.0, %v883
  %v885 = vmul.f32 %v882, %v884
  %v886 = vadd.f32 %v882, %v885
  %vm887 = vweird.f32 %v866
  %vm888 = vweird.f32 %v882
  %vm889 = vmor %vm887, %vm888
  %v890 = vsel %vm889, %v882, %v886
  %v891 = vand.u32 2147483647, %v866
  %vm892 = vcmp.eq.f32.partialorder %v891, 8.507059e+37
  %v893 = vand.u32 %v866, 2147483648
  %v894 = vor.u32 1.1754944e-38, %v893
  %v895 = vsel %vm892, %v894, %v890
  %v896 = vmul.f32 %v860, %v895
  %897 = vrot.lane.b32.xlu0 %v776, 96
  %v898 = vpop.permute.xlu0 %897
  %899 = vrot.lane.b32.xlu0 %v779, 96
  %v900 = vpop.permute.xlu0 %899
  %v904 = vsel %vm848, %v881, 0
  %906 = vmatpush.msra.mxu0 0.0
  %907 = vmatpush.msra.mxu0 0.0
  %908 = vmatpush.msra.mxu0 0.0
  %909 = vmatpush.msra.mxu0 0.0
  %910 = vmatpush.msra.mxu0 0.0
  %911 = vmatpush.msra.mxu0 0.0
  %912 = vmatpush.msra.mxu0 0.0
  %913 = vmatpush.msra.mxu0 0.0
  %914 = vmatpush.msra.mxu0 0.0
  %915 = vmatpush.msra.mxu0 0.0
  %916 = vmatpush.msra.mxu0 0.0
  %917 = vmatpush.msra.mxu0 0.0
  %918 = vmatpush.msra.mxu0 0.0
  %919 = vmatpush.msra.mxu0 0.0
  %920 = vmatpush.msra.mxu0 %v900
  %921 = vmatpush.msra.mxu0 %v898
  %922 = vmatmul.f32.gmra.mxu0 %v904
  %v923 = vpop.f32.mrf.mxu0
  %v924 = vadd.f32 0.0, %v923
  %925 = vdwg.mxu0
  %926 = vrot.lane.b32.xlu0 %v782, 96
  %v927 = vpop.permute.xlu0 %926
  %928 = vrot.lane.b32.xlu0 %v785, 96
  %v929 = vpop.permute.xlu0 %928
  %v933 = vsel %vm848, %v896, 0
  %935 = vmatpush.msra.mxu0 0.0
  %936 = vmatpush.msra.mxu0 0.0
  %937 = vmatpush.msra.mxu0 0.0
  %938 = vmatpush.msra.mxu0 0.0
  %939 = vmatpush.msra.mxu0 0.0
  %940 = vmatpush.msra.mxu0 0.0
  %941 = vmatpush.msra.mxu0 0.0
  %942 = vmatpush.msra.mxu0 0.0
  %943 = vmatpush.msra.mxu0 0.0
  %944 = vmatpush.msra.mxu0 0.0
  %945 = vmatpush.msra.mxu0 0.0
  %946 = vmatpush.msra.mxu0 0.0
  %947 = vmatpush.msra.mxu0 0.0
  %948 = vmatpush.msra.mxu0 0.0
  %949 = vmatpush.msra.mxu0 %v929
  %950 = vmatpush.msra.mxu0 %v927
  %951 = vmatmul.f32.gmra.mxu0 %v933
  %v952 = vpop.f32.mrf.mxu0
  %v953 = vadd.f32 0.0, %v952
  %954 = vdwg.mxu0
  %955 = vrot.lane.b32.xlu0 %v787, 120
  %v956 = vpop.permute.xlu0 %955
  %957 = vrot.lane.b32.xlu0 %v776, 120
  %v958 = vpop.permute.xlu0 %957
  %959 = vrot.lane.b32.xlu0 %v779, 120
  %v960 = vpop.permute.xlu0 %959
  %v961 = vsel %vm789, %v956, 0
  %v963 = vsel %vm789, %v958, 0
  %v965 = vsel %vm789, %v960, 0
  %967 = vmatpush.xpose.msra.mxu0 0.0
  %968 = vmatpush.xpose.msra.mxu0 0.0
  %969 = vmatpush.xpose.msra.mxu0 0.0
  %970 = vmatpush.xpose.msra.mxu0 0.0
  %971 = vmatpush.xpose.msra.mxu0 0.0
  %972 = vmatpush.xpose.msra.mxu0 0.0
  %973 = vmatpush.xpose.msra.mxu0 0.0
  %974 = vmatpush.xpose.msra.mxu0 0.0
  %975 = vmatpush.xpose.msra.mxu0 0.0
  %976 = vmatpush.xpose.msra.mxu0 0.0
  %977 = vmatpush.xpose.msra.mxu0 0.0
  %978 = vmatpush.xpose.msra.mxu0 0.0
  %979 = vmatpush.xpose.msra.mxu0 0.0
  %980 = vmatpush.xpose.msra.mxu0 0.0
  %981 = vmatpush.xpose.msra.mxu0 %v965
  %982 = vmatpush.xpose.msra.mxu0 %v963
  %983 = vmatmul.f32.gmra.mxu0 %v961
  %v984 = vpop.f32.mrf.mxu0
  %v985 = vadd.f32 0.0, %v984
  %986 = vdwg.mxu0
  %987 = vrot.lane.b32.xlu0 %v788, 120
  %v988 = vpop.permute.xlu0 %987
  %989 = vrot.lane.b32.xlu0 %v782, 120
  %v990 = vpop.permute.xlu0 %989
  %991 = vrot.lane.b32.xlu0 %v785, 120
  %v992 = vpop.permute.xlu0 %991
  %v993 = vsel %vm789, %v988, 0
  %v995 = vsel %vm789, %v990, 0
  %v997 = vsel %vm789, %v992, 0
  %999 = vmatpush.xpose.msra.mxu0 0.0
  %1000 = vmatpush.xpose.msra.mxu0 0.0
  %1001 = vmatpush.xpose.msra.mxu0 0.0
  %1002 = vmatpush.xpose.msra.mxu0 0.0
  %1003 = vmatpush.xpose.msra.mxu0 0.0
  %1004 = vmatpush.xpose.msra.mxu0 0.0
  %1005 = vmatpush.xpose.msra.mxu0 0.0
  %1006 = vmatpush.xpose.msra.mxu0 0.0
  %1007 = vmatpush.xpose.msra.mxu0 0.0
  %1008 = vmatpush.xpose.msra.mxu0 0.0
  %1009 = vmatpush.xpose.msra.mxu0 0.0
  %1010 = vmatpush.xpose.msra.mxu0 0.0
  %1011 = vmatpush.xpose.msra.mxu0 0.0
  %1012 = vmatpush.xpose.msra.mxu0 0.0
  %1013 = vmatpush.xpose.msra.mxu0 %v997
  %1014 = vmatpush.xpose.msra.mxu0 %v995
  %1015 = vmatmul.f32.gmra.mxu0 %v993
  %v1016 = vpop.f32.mrf.mxu0
  %v1017 = vadd.f32 0.0, %v1016
  %1018 = vdwg.mxu0
  %v1019 = vsel %vm848, %v985, -inf
  %1020 = vmax.xlane.f32.xlu0 %v1019
  %v1021 = vpop.xlane.xlu0 %1020
  %v1022 = vsel %vm848, %v1017, -inf
  %1023 = vmax.xlane.f32.xlu0 %v1022
  %v1024 = vpop.xlane.xlu0 %1023
  %v1025 = vsub.f32 %v985, %v1021
  %v1026 = vsub.f32 %v1017, %v1024
  %v1027 = vmul.f32 %v1025, 1.442695
  %v1028 = vpow.pop %v1027
  %v1029 = vmul.f32 %v1026, 1.442695
  %v1030 = vpow.pop %v1029
  %v1031 = vsel %vm848, %v1028, 0.0
  %1032 = vadd.xlane.f32.xlu0 %v1031
  %v1033 = vpop.xlane.xlu0 %1032
  %v1034 = vsel %vm848, %v1030, 0.0
  %1035 = vadd.xlane.f32.xlu0 %v1034
  %v1036 = vpop.xlane.xlu0 %1035
  %v1037 = vrcp.pop %v1033
  %v1038 = vmul.f32 %v1033, %v1037
  %v1039 = vsub.f32 1.0, %v1038
  %v1040 = vmul.f32 %v1037, %v1039
  %v1041 = vadd.f32 %v1037, %v1040
  %vm1042 = vweird.f32 %v1033
  %vm1043 = vweird.f32 %v1037
  %vm1044 = vmor %vm1042, %vm1043
  %v1045 = vsel %vm1044, %v1037, %v1041
  %v1046 = vand.u32 2147483647, %v1033
  %vm1047 = vcmp.eq.f32.partialorder %v1046, 8.507059e+37
  %v1048 = vand.u32 %v1033, 2147483648
  %v1049 = vor.u32 1.1754944e-38, %v1048
  %v1050 = vsel %vm1047, %v1049, %v1045
  %v1051 = vmul.f32 %v1028, %v1050
  %v1052 = vrcp.pop %v1036
  %v1053 = vmul.f32 %v1036, %v1052
  %v1054 = vsub.f32 1.0, %v1053
  %v1055 = vmul.f32 %v1052, %v1054
  %v1056 = vadd.f32 %v1052, %v1055
  %vm1057 = vweird.f32 %v1036
  %vm1058 = vweird.f32 %v1052
  %vm1059 = vmor %vm1057, %vm1058
  %v1060 = vsel %vm1059, %v1052, %v1056
  %v1061 = vand.u32 2147483647, %v1036
  %vm1062 = vcmp.eq.f32.partialorder %v1061, 8.507059e+37
  %v1063 = vand.u32 %v1036, 2147483648
  %v1064 = vor.u32 1.1754944e-38, %v1063
  %v1065 = vsel %vm1062, %v1064, %v1060
  %v1066 = vmul.f32 %v1030, %v1065
  %1067 = vrot.lane.b32.xlu0 %v776, 88
  %v1068 = vpop.permute.xlu0 %1067
  %1069 = vrot.lane.b32.xlu0 %v779, 88
  %v1070 = vpop.permute.xlu0 %1069
  %v1074 = vsel %vm848, %v1051, 0
  %1076 = vmatpush.msra.mxu0 0.0
  %1077 = vmatpush.msra.mxu0 0.0
  %1078 = vmatpush.msra.mxu0 0.0
  %1079 = vmatpush.msra.mxu0 0.0
  %1080 = vmatpush.msra.mxu0 0.0
  %1081 = vmatpush.msra.mxu0 0.0
  %1082 = vmatpush.msra.mxu0 0.0
  %1083 = vmatpush.msra.mxu0 0.0
  %1084 = vmatpush.msra.mxu0 0.0
  %1085 = vmatpush.msra.mxu0 0.0
  %1086 = vmatpush.msra.mxu0 0.0
  %1087 = vmatpush.msra.mxu0 0.0
  %1088 = vmatpush.msra.mxu0 0.0
  %1089 = vmatpush.msra.mxu0 0.0
  %1090 = vmatpush.msra.mxu0 %v1070
  %1091 = vmatpush.msra.mxu0 %v1068
  %1092 = vmatmul.f32.gmra.mxu0 %v1074
  %v1093 = vpop.f32.mrf.mxu0
  %v1094 = vadd.f32 0.0, %v1093
  %1095 = vdwg.mxu0
  %1096 = vrot.lane.b32.xlu0 %v782, 88
  %v1097 = vpop.permute.xlu0 %1096
  %1098 = vrot.lane.b32.xlu0 %v785, 88
  %v1099 = vpop.permute.xlu0 %1098
  %v1103 = vsel %vm848, %v1066, 0
  %1105 = vmatpush.msra.mxu0 0.0
  %1106 = vmatpush.msra.mxu0 0.0
  %1107 = vmatpush.msra.mxu0 0.0
  %1108 = vmatpush.msra.mxu0 0.0
  %1109 = vmatpush.msra.mxu0 0.0
  %1110 = vmatpush.msra.mxu0 0.0
  %1111 = vmatpush.msra.mxu0 0.0
  %1112 = vmatpush.msra.mxu0 0.0
  %1113 = vmatpush.msra.mxu0 0.0
  %1114 = vmatpush.msra.mxu0 0.0
  %1115 = vmatpush.msra.mxu0 0.0
  %1116 = vmatpush.msra.mxu0 0.0
  %1117 = vmatpush.msra.mxu0 0.0
  %1118 = vmatpush.msra.mxu0 0.0
  %1119 = vmatpush.msra.mxu0 %v1099
  %1120 = vmatpush.msra.mxu0 %v1097
  %1121 = vmatmul.f32.gmra.mxu0 %v1103
  %v1122 = vpop.f32.mrf.mxu0
  %v1123 = vadd.f32 0.0, %v1122
  %1124 = vdwg.mxu0
  %1125 = vrot.lane.b32.xlu0 %v787, 112
  %v1126 = vpop.permute.xlu0 %1125
  %1127 = vrot.lane.b32.xlu0 %v776, 112
  %v1128 = vpop.permute.xlu0 %1127
  %1129 = vrot.lane.b32.xlu0 %v779, 112
  %v1130 = vpop.permute.xlu0 %1129
  %v1131 = vsel %vm789, %v1126, 0
  %v1133 = vsel %vm789, %v1128, 0
  %v1135 = vsel %vm789, %v1130, 0
  %1137 = vmatpush.xpose.msra.mxu0 0.0
  %1138 = vmatpush.xpose.msra.mxu0 0.0
  %1139 = vmatpush.xpose.msra.mxu0 0.0
  %1140 = vmatpush.xpose.msra.mxu0 0.0
  %1141 = vmatpush.xpose.msra.mxu0 0.0
  %1142 = vmatpush.xpose.msra.mxu0 0.0
  %1143 = vmatpush.xpose.msra.mxu0 0.0
  %1144 = vmatpush.xpose.msra.mxu0 0.0
  %1145 = vmatpush.xpose.msra.mxu0 0.0
  %1146 = vmatpush.xpose.msra.mxu0 0.0
  %1147 = vmatpush.xpose.msra.mxu0 0.0
  %1148 = vmatpush.xpose.msra.mxu0 0.0
  %1149 = vmatpush.xpose.msra.mxu0 0.0
  %1150 = vmatpush.xpose.msra.mxu0 0.0
  %1151 = vmatpush.xpose.msra.mxu0 %v1135
  %1152 = vmatpush.xpose.msra.mxu0 %v1133
  %1153 = vmatmul.f32.gmra.mxu0 %v1131
  %v1154 = vpop.f32.mrf.mxu0
  %v1155 = vadd.f32 0.0, %v1154
  %1156 = vdwg.mxu0
  %1157 = vrot.lane.b32.xlu0 %v788, 112
  %v1158 = vpop.permute.xlu0 %1157
  %1159 = vrot.lane.b32.xlu0 %v782, 112
  %v1160 = vpop.permute.xlu0 %1159
  %1161 = vrot.lane.b32.xlu0 %v785, 112
  %v1162 = vpop.permute.xlu0 %1161
  %v1163 = vsel %vm789, %v1158, 0
  %v1165 = vsel %vm789, %v1160, 0
  %v1167 = vsel %vm789, %v1162, 0
  %1169 = vmatpush.xpose.msra.mxu0 0.0
  %1170 = vmatpush.xpose.msra.mxu0 0.0
  %1171 = vmatpush.xpose.msra.mxu0 0.0
  %1172 = vmatpush.xpose.msra.mxu0 0.0
  %1173 = vmatpush.xpose.msra.mxu0 0.0
  %1174 = vmatpush.xpose.msra.mxu0 0.0
  %1175 = vmatpush.xpose.msra.mxu0 0.0
  %1176 = vmatpush.xpose.msra.mxu0 0.0
  %1177 = vmatpush.xpose.msra.mxu0 0.0
  %1178 = vmatpush.xpose.msra.mxu0 0.0
  %1179 = vmatpush.xpose.msra.mxu0 0.0
  %1180 = vmatpush.xpose.msra.mxu0 0.0
  %1181 = vmatpush.xpose.msra.mxu0 0.0
  %1182 = vmatpush.xpose.msra.mxu0 0.0
  %1183 = vmatpush.xpose.msra.mxu0 %v1167
  %1184 = vmatpush.xpose.msra.mxu0 %v1165
  %1185 = vmatmul.f32.gmra.mxu0 %v1163
  %v1186 = vpop.f32.mrf.mxu0
  %v1187 = vadd.f32 0.0, %v1186
  %1188 = vdwg.mxu0
  %v1189 = vsel %vm848, %v1155, -inf
  %1190 = vmax.xlane.f32.xlu0 %v1189
  %v1191 = vpop.xlane.xlu0 %1190
  %v1192 = vsel %vm848, %v1187, -inf
  %1193 = vmax.xlane.f32.xlu0 %v1192
  %v1194 = vpop.xlane.xlu0 %1193
  %v1195 = vsub.f32 %v1155, %v1191
  %v1196 = vsub.f32 %v1187, %v1194
  %v1197 = vmul.f32 %v1195, 1.442695
  %v1198 = vpow.pop %v1197
  %v1199 = vmul.f32 %v1196, 1.442695
  %v1200 = vpow.pop %v1199
  %v1201 = vsel %vm848, %v1198, 0.0
  %1202 = vadd.xlane.f32.xlu0 %v1201
  %v1203 = vpop.xlane.xlu0 %1202
  %v1204 = vsel %vm848, %v1200, 0.0
  %1205 = vadd.xlane.f32.xlu0 %v1204
  %v1206 = vpop.xlane.xlu0 %1205
  %v1207 = vrcp.pop %v1203
  %v1208 = vmul.f32 %v1203, %v1207
  %v1209 = vsub.f32 1.0, %v1208
  %v1210 = vmul.f32 %v1207, %v1209
  %v1211 = vadd.f32 %v1207, %v1210
  %vm1212 = vweird.f32 %v1203
  %vm1213 = vweird.f32 %v1207
  %vm1214 = vmor %vm1212, %vm1213
  %v1215 = vsel %vm1214, %v1207, %v1211
  %v1216 = vand.u32 2147483647, %v1203
  %vm1217 = vcmp.eq.f32.partialorder %v1216, 8.507059e+37
  %v1218 = vand.u32 %v1203, 2147483648
  %v1219 = vor.u32 1.1754944e-38, %v1218
  %v1220 = vsel %vm1217, %v1219, %v1215
  %v1221 = vmul.f32 %v1198, %v1220
  %v1222 = vrcp.pop %v1206
  %v1223 = vmul.f32 %v1206, %v1222
  %v1224 = vsub.f32 1.0, %v1223
  %v1225 = vmul.f32 %v1222, %v1224
  %v1226 = vadd.f32 %v1222, %v1225
  %vm1227 = vweird.f32 %v1206
  %vm1228 = vweird.f32 %v1222
  %vm1229 = vmor %vm1227, %vm1228
  %v1230 = vsel %vm1229, %v1222, %v1226
  %v1231 = vand.u32 2147483647, %v1206
  %vm1232 = vcmp.eq.f32.partialorder %v1231, 8.507059e+37
  %v1233 = vand.u32 %v1206, 2147483648
  %v1234 = vor.u32 1.1754944e-38, %v1233
  %v1235 = vsel %vm1232, %v1234, %v1230
  %v1236 = vmul.f32 %v1200, %v1235
  %1237 = vrot.lane.b32.xlu0 %v776, 80
  %v1238 = vpop.permute.xlu0 %1237
  %1239 = vrot.lane.b32.xlu0 %v779, 80
  %v1240 = vpop.permute.xlu0 %1239
  %v1244 = vsel %vm848, %v1221, 0
  %1246 = vmatpush.msra.mxu0 0.0
  %1247 = vmatpush.msra.mxu0 0.0
  %1248 = vmatpush.msra.mxu0 0.0
  %1249 = vmatpush.msra.mxu0 0.0
  %1250 = vmatpush.msra.mxu0 0.0
  %1251 = vmatpush.msra.mxu0 0.0
  %1252 = vmatpush.msra.mxu0 0.0
  %1253 = vmatpush.msra.mxu0 0.0
  %1254 = vmatpush.msra.mxu0 0.0
  %1255 = vmatpush.msra.mxu0 0.0
  %1256 = vmatpush.msra.mxu0 0.0
  %1257 = vmatpush.msra.mxu0 0.0
  %1258 = vmatpush.msra.mxu0 0.0
  %1259 = vmatpush.msra.mxu0 0.0
  %1260 = vmatpush.msra.mxu0 %v1240
  %1261 = vmatpush.msra.mxu0 %v1238
  %1262 = vmatmul.f32.gmra.mxu0 %v1244
  %v1263 = vpop.f32.mrf.mxu0
  %v1264 = vadd.f32 0.0, %v1263
  %1265 = vdwg.mxu0
  %1266 = vrot.lane.b32.xlu0 %v782, 80
  %v1267 = vpop.permute.xlu0 %1266
  %1268 = vrot.lane.b32.xlu0 %v785, 80
  %v1269 = vpop.permute.xlu0 %1268
  %v1273 = vsel %vm848, %v1236, 0
  %1275 = vmatpush.msra.mxu0 0.0
  %1276 = vmatpush.msra.mxu0 0.0
  %1277 = vmatpush.msra.mxu0 0.0
  %1278 = vmatpush.msra.mxu0 0.0
  %1279 = vmatpush.msra.mxu0 0.0
  %1280 = vmatpush.msra.mxu0 0.0
  %1281 = vmatpush.msra.mxu0 0.0
  %1282 = vmatpush.msra.mxu0 0.0
  %1283 = vmatpush.msra.mxu0 0.0
  %1284 = vmatpush.msra.mxu0 0.0
  %1285 = vmatpush.msra.mxu0 0.0
  %1286 = vmatpush.msra.mxu0 0.0
  %1287 = vmatpush.msra.mxu0 0.0
  %1288 = vmatpush.msra.mxu0 0.0
  %1289 = vmatpush.msra.mxu0 %v1269
  %1290 = vmatpush.msra.mxu0 %v1267
  %1291 = vmatmul.f32.gmra.mxu0 %v1273
  %v1292 = vpop.f32.mrf.mxu0
  %v1293 = vadd.f32 0.0, %v1292
  %1294 = vdwg.mxu0
  %1295 = vrot.lane.b32.xlu0 %v787, 104
  %v1296 = vpop.permute.xlu0 %1295
  %1297 = vrot.lane.b32.xlu0 %v776, 104
  %v1298 = vpop.permute.xlu0 %1297
  %1299 = vrot.lane.b32.xlu0 %v779, 104
  %v1300 = vpop.permute.xlu0 %1299
  %v1301 = vsel %vm789, %v1296, 0
  %v1303 = vsel %vm789, %v1298, 0
  %v1305 = vsel %vm789, %v1300, 0
  %1307 = vmatpush.xpose.msra.mxu0 0.0
  %1308 = vmatpush.xpose.msra.mxu0 0.0
  %1309 = vmatpush.xpose.msra.mxu0 0.0
  %1310 = vmatpush.xpose.msra.mxu0 0.0
  %1311 = vmatpush.xpose.msra.mxu0 0.0
  %1312 = vmatpush.xpose.msra.mxu0 0.0
  %1313 = vmatpush.xpose.msra.mxu0 0.0
  %1314 = vmatpush.xpose.msra.mxu0 0.0
  %1315 = vmatpush.xpose.msra.mxu0 0.0
  %1316 = vmatpush.xpose.msra.mxu0 0.0
  %1317 = vmatpush.xpose.msra.mxu0 0.0
  %1318 = vmatpush.xpose.msra.mxu0 0.0
  %1319 = vmatpush.xpose.msra.mxu0 0.0
  %1320 = vmatpush.xpose.msra.mxu0 0.0
  %1321 = vmatpush.xpose.msra.mxu0 %v1305
  %1322 = vmatpush.xpose.msra.mxu0 %v1303
  %1323 = vmatmul.f32.gmra.mxu0 %v1301
  %v1324 = vpop.f32.mrf.mxu0
  %v1325 = vadd.f32 0.0, %v1324
  %1326 = vdwg.mxu0
  %1327 = vrot.lane.b32.xlu0 %v788, 104
  %v1328 = vpop.permute.xlu0 %1327
  %1329 = vrot.lane.b32.xlu0 %v782, 104
  %v1330 = vpop.permute.xlu0 %1329
  %1331 = vrot.lane.b32.xlu0 %v785, 104
  %v1332 = vpop.permute.xlu0 %1331
  %v1333 = vsel %vm789, %v1328, 0
  %v1335 = vsel %vm789, %v1330, 0
  %v1337 = vsel %vm789, %v1332, 0
  %1339 = vmatpush.xpose.msra.mxu0 0.0
  %1340 = vmatpush.xpose.msra.mxu0 0.0
  %1341 = vmatpush.xpose.msra.mxu0 0.0
  %1342 = vmatpush.xpose.msra.mxu0 0.0
  %1343 = vmatpush.xpose.msra.mxu0 0.0
  %1344 = vmatpush.xpose.msra.mxu0 0.0
  %1345 = vmatpush.xpose.msra.mxu0 0.0
  %1346 = vmatpush.xpose.msra.mxu0 0.0
  %1347 = vmatpush.xpose.msra.mxu0 0.0
  %1348 = vmatpush.xpose.msra.mxu0 0.0
  %1349 = vmatpush.xpose.msra.mxu0 0.0
  %1350 = vmatpush.xpose.msra.mxu0 0.0
  %1351 = vmatpush.xpose.msra.mxu0 0.0
  %1352 = vmatpush.xpose.msra.mxu0 0.0
  %1353 = vmatpush.xpose.msra.mxu0 %v1337
  %1354 = vmatpush.xpose.msra.mxu0 %v1335
  %1355 = vmatmul.f32.gmra.mxu0 %v1333
  %v1356 = vpop.f32.mrf.mxu0
  %v1357 = vadd.f32 0.0, %v1356
  %1358 = vdwg.mxu0
  %v1359 = vsel %vm848, %v1325, -inf
  %1360 = vmax.xlane.f32.xlu0 %v1359
  %v1361 = vpop.xlane.xlu0 %1360
  %v1362 = vsel %vm848, %v1357, -inf
  %1363 = vmax.xlane.f32.xlu0 %v1362
  %v1364 = vpop.xlane.xlu0 %1363
  %v1365 = vsub.f32 %v1325, %v1361
  %v1366 = vsub.f32 %v1357, %v1364
  %v1367 = vmul.f32 %v1365, 1.442695
  %v1368 = vpow.pop %v1367
  %v1369 = vmul.f32 %v1366, 1.442695
  %v1370 = vpow.pop %v1369
  %v1371 = vsel %vm848, %v1368, 0.0
  %1372 = vadd.xlane.f32.xlu0 %v1371
  %v1373 = vpop.xlane.xlu0 %1372
  %v1374 = vsel %vm848, %v1370, 0.0
  %1375 = vadd.xlane.f32.xlu0 %v1374
  %v1376 = vpop.xlane.xlu0 %1375
  %v1377 = vrcp.pop %v1373
  %v1378 = vmul.f32 %v1373, %v1377
  %v1379 = vsub.f32 1.0, %v1378
  %v1380 = vmul.f32 %v1377, %v1379
  %v1381 = vadd.f32 %v1377, %v1380
  %vm1382 = vweird.f32 %v1373
  %vm1383 = vweird.f32 %v1377
  %vm1384 = vmor %vm1382, %vm1383
  %v1385 = vsel %vm1384, %v1377, %v1381
  %v1386 = vand.u32 2147483647, %v1373
  %vm1387 = vcmp.eq.f32.partialorder %v1386, 8.507059e+37
  %v1388 = vand.u32 %v1373, 2147483648
  %v1389 = vor.u32 1.1754944e-38, %v1388
  %v1390 = vsel %vm1387, %v1389, %v1385
  %v1391 = vmul.f32 %v1368, %v1390
  %v1392 = vrcp.pop %v1376
  %v1393 = vmul.f32 %v1376, %v1392
  %v1394 = vsub.f32 1.0, %v1393
  %v1395 = vmul.f32 %v1392, %v1394
  %v1396 = vadd.f32 %v1392, %v1395
  %vm1397 = vweird.f32 %v1376
  %vm1398 = vweird.f32 %v1392
  %vm1399 = vmor %vm1397, %vm1398
  %v1400 = vsel %vm1399, %v1392, %v1396
  %v1401 = vand.u32 2147483647, %v1376
  %vm1402 = vcmp.eq.f32.partialorder %v1401, 8.507059e+37
  %v1403 = vand.u32 %v1376, 2147483648
  %v1404 = vor.u32 1.1754944e-38, %v1403
  %v1405 = vsel %vm1402, %v1404, %v1400
  %v1406 = vmul.f32 %v1370, %v1405
  %1407 = vrot.lane.b32.xlu0 %v776, 72
  %v1408 = vpop.permute.xlu0 %1407
  %1409 = vrot.lane.b32.xlu0 %v779, 72
  %v1410 = vpop.permute.xlu0 %1409
  %v1414 = vsel %vm848, %v1391, 0
  %1416 = vmatpush.msra.mxu0 0.0
  %1417 = vmatpush.msra.mxu0 0.0
  %1418 = vmatpush.msra.mxu0 0.0
  %1419 = vmatpush.msra.mxu0 0.0
  %1420 = vmatpush.msra.mxu0 0.0
  %1421 = vmatpush.msra.mxu0 0.0
  %1422 = vmatpush.msra.mxu0 0.0
  %1423 = vmatpush.msra.mxu0 0.0
  %1424 = vmatpush.msra.mxu0 0.0
  %1425 = vmatpush.msra.mxu0 0.0
  %1426 = vmatpush.msra.mxu0 0.0
  %1427 = vmatpush.msra.mxu0 0.0
  %1428 = vmatpush.msra.mxu0 0.0
  %1429 = vmatpush.msra.mxu0 0.0
  %1430 = vmatpush.msra.mxu0 %v1410
  %1431 = vmatpush.msra.mxu0 %v1408
  %1432 = vmatmul.f32.gmra.mxu0 %v1414
  %v1433 = vpop.f32.mrf.mxu0
  %v1434 = vadd.f32 0.0, %v1433
  %1435 = vdwg.mxu0
  %1436 = vrot.lane.b32.xlu0 %v782, 72
  %v1437 = vpop.permute.xlu0 %1436
  %1438 = vrot.lane.b32.xlu0 %v785, 72
  %v1439 = vpop.permute.xlu0 %1438
  %v1443 = vsel %vm848, %v1406, 0
  %1445 = vmatpush.msra.mxu0 0.0
  %1446 = vmatpush.msra.mxu0 0.0
  %1447 = vmatpush.msra.mxu0 0.0
  %1448 = vmatpush.msra.mxu0 0.0
  %1449 = vmatpush.msra.mxu0 0.0
  %1450 = vmatpush.msra.mxu0 0.0
  %1451 = vmatpush.msra.mxu0 0.0
  %1452 = vmatpush.msra.mxu0 0.0
  %1453 = vmatpush.msra.mxu0 0.0
  %1454 = vmatpush.msra.mxu0 0.0
  %1455 = vmatpush.msra.mxu0 0.0
  %1456 = vmatpush.msra.mxu0 0.0
  %1457 = vmatpush.msra.mxu0 0.0
  %1458 = vmatpush.msra.mxu0 0.0
  %1459 = vmatpush.msra.mxu0 %v1439
  %1460 = vmatpush.msra.mxu0 %v1437
  %1461 = vmatmul.f32.gmra.mxu0 %v1443
  %v1462 = vpop.f32.mrf.mxu0
  %v1463 = vadd.f32 0.0, %v1462
  %1464 = vdwg.mxu0
  %1467 = vrot.lane.b32.xlu0 %v1094, 8
  %v1468 = vpop.permute.xlu0 %1467
  %1469 = vrot.lane.b32.xlu0 %v1123, 8
  %v1470 = vpop.permute.xlu0 %1469
  %1475 = vrot.lane.b32.xlu0 %v1264, 16
  %v1476 = vpop.permute.xlu0 %1475
  %1477 = vrot.lane.b32.xlu0 %v1293, 16
  %v1478 = vpop.permute.xlu0 %1477
  %1483 = vrot.lane.b32.xlu0 %v1434, 24
  %v1484 = vpop.permute.xlu0 %1483
  %1485 = vrot.lane.b32.xlu0 %v1463, 24
  %v1486 = vpop.permute.xlu0 %1485
  %v1489 = vsel %vm789, %v924, %v1468
  %v1490 = vsel %vm789, %v953, %v1470
  %v1491 = vsel %vm848, %v1489, %v1476
  %v1492 = vsel %vm848, %v1490, %v1478
  %vm1493 = vcmask 195584
  %v1494 = vsel %vm1493, %v1491, %v1484
  %v1495 = vsel %vm1493, %v1492, %v1486
  %v1496 = vld [vmem:[%s9] sm:$0xff]
  %v1497 = vld [vmem:[%s9 + $0x8] sm:$0xff]
  %v1498 = vld [vmem:[%s9 + $0x10] sm:$0xff]
  %v1499 = vld [vmem:[%s9 + $0x18] sm:$0xff]
  %v1500 = vld [vmem:[%s10] sm:$0x1]
  %v1502 = vperm.slane %v1500, 0
  %v1505 = vsel %vm64, %v1494, 0
  %v1508 = vsel %vm64, %v1495, 0
  %1510 = vmatpush.msra.mxu0 0.0
  %1511 = vmatpush.msra.mxu0 0.0
  %1512 = vmatpush.msra.mxu0 0.0
  %1513 = vmatpush.msra.mxu0 0.0
  %1514 = vmatpush.msra.mxu0 0.0
  %1515 = vmatpush.msra.mxu0 0.0
  %1516 = vmatpush.msra.mxu0 0.0
  %1517 = vmatpush.msra.mxu0 0.0
  %1518 = vmatpush.msra.mxu0 0.0
  %1519 = vmatpush.msra.mxu0 0.0
  %1520 = vmatpush.msra.mxu0 0.0
  %1521 = vmatpush.msra.mxu0 0.0
  %1522 = vmatpush.msra.mxu0 %v1499
  %1523 = vmatpush.msra.mxu0 %v1498
  %1524 = vmatpush.msra.mxu0 %v1497
  %1525 = vmatpush.msra.mxu0 %v1496
  %1526 = vmatmul.f32.gmra.mxu0 %v1505
  %v1527 = vpop.f32.mrf.mxu0
  %v1528 = vadd.f32 %v1502, %v1527
  %1529 = vmatmul.f32.gmra.mxu0 %v1508
  %v1530 = vpop.f32.mrf.mxu0
  %v1531 = vadd.f32 %v1502, %v1530
  %1532 = vdwg.mxu0
  %v1533 = vsel %vm64, %v1528, -inf
  %1534 = vmax.xlane.f32.xlu0 %v1533
  %v1535 = vpop.xlane.xlu0 %1534
  %v1536 = vsel %vm64, %v1531, -inf
  %1537 = vmax.xlane.f32.xlu0 %v1536
  %v1538 = vpop.xlane.xlu0 %1537
  %v1539 = vsub.f32 %v1528, %v1535
  %v1540 = vsub.f32 %v1531, %v1538
  %v1541 = vmul.f32 %v1539, 1.442695
  %v1542 = vpow.pop %v1541
  %v1543 = vmul.f32 %v1540, 1.442695
  %v1544 = vpow.pop %v1543
  %v1545 = vsel %vm64, %v1542, 0.0
  %1546 = vadd.xlane.f32.xlu0 %v1545
  %v1547 = vpop.xlane.xlu0 %1546
  %v1548 = vsel %vm64, %v1544, 0.0
  %1549 = vadd.xlane.f32.xlu0 %v1548
  %v1550 = vpop.xlane.xlu0 %1549
  %v1551 = vlog2.pop %v1547
  %v1552 = vmul.f32 %v1551, 0.6931472
  %v1553 = vlog2.pop %v1550
  %v1554 = vmul.f32 %v1553, 0.6931472
  %v1555 = vsub.f32 %v1539, %v1552
  %v1556 = vsub.f32 %v1540, %v1554
  %v1557 = vrcp.pop %v1547
  %v1558 = vmul.f32 %v1547, %v1557
  %v1559 = vsub.f32 1.0, %v1558
  %v1560 = vmul.f32 %v1557, %v1559
  %v1561 = vadd.f32 %v1557, %v1560
  %vm1562 = vweird.f32 %v1547
  %vm1563 = vweird.f32 %v1557
  %vm1564 = vmor %vm1562, %vm1563
  %v1565 = vsel %vm1564, %v1557, %v1561
  %v1566 = vand.u32 2147483647, %v1547
  %vm1567 = vcmp.eq.f32.partialorder %v1566, 8.507059e+37
  %v1568 = vand.u32 %v1547, 2147483648
  %v1569 = vor.u32 1.1754944e-38, %v1568
  %v1570 = vsel %vm1567, %v1569, %v1565
  %v1571 = vmul.f32 %v1542, %v1570
  %v1572 = vrcp.pop %v1550
  %v1573 = vmul.f32 %v1550, %v1572
  %v1574 = vsub.f32 1.0, %v1573
  %v1575 = vmul.f32 %v1572, %v1574
  %v1576 = vadd.f32 %v1572, %v1575
  %vm1577 = vweird.f32 %v1550
  %vm1578 = vweird.f32 %v1572
  %vm1579 = vmor %vm1577, %vm1578
  %v1580 = vsel %vm1579, %v1572, %v1576
  %v1581 = vand.u32 2147483647, %v1550
  %vm1582 = vcmp.eq.f32.partialorder %v1581, 8.507059e+37
  %v1583 = vand.u32 %v1550, 2147483648
  %v1584 = vor.u32 1.1754944e-38, %v1583
  %v1585 = vsel %vm1582, %v1584, %v1580
  %v1586 = vmul.f32 %v1544, %v1585
  %v1588 = vrot.slane %v1555, 1
  %1589 = vrot.lane.b32.xlu0 %v1588, 32
  %v1590 = vpop.permute.xlu0 %1589
  %v1592 = vrot.slane %v1555, 2
  %1593 = vrot.lane.b32.xlu0 %v1592, 64
  %v1594 = vpop.permute.xlu0 %1593
  %v1596 = vrot.slane %v1555, 3
  %1597 = vrot.lane.b32.xlu0 %v1596, 96
  %v1598 = vpop.permute.xlu0 %1597
  %v1600 = vrot.slane %v1555, 4
  %v1602 = vrot.slane %v1555, 5
  %1603 = vrot.lane.b32.xlu0 %v1602, 32
  %v1604 = vpop.permute.xlu0 %1603
  %v1606 = vrot.slane %v1555, 6
  %1607 = vrot.lane.b32.xlu0 %v1606, 64
  %v1608 = vpop.permute.xlu0 %1607
  %v1610 = vrot.slane %v1555, 7
  %1611 = vrot.lane.b32.xlu0 %v1610, 96
  %v1612 = vpop.permute.xlu0 %1611
  %v1614 = vsel %vm64, %v1555, %v1590
  %vm1615 = vcmask 523264
  %v1616 = vsel %vm1615, %v1614, %v1594
  %vm1617 = vcmask 785408
  %v1618 = vsel %vm1617, %v1616, %v1598
  %v1619 = vsel %vm64, %v1600, %v1604
  %v1620 = vsel %vm1615, %v1619, %v1608
  %v1621 = vsel %vm1617, %v1620, %v1612
  %v1623 = vrot.slane %v1556, 1
  %1624 = vrot.lane.b32.xlu0 %v1623, 32
  %v1625 = vpop.permute.xlu0 %1624
  %v1627 = vrot.slane %v1556, 2
  %1628 = vrot.lane.b32.xlu0 %v1627, 64
  %v1629 = vpop.permute.xlu0 %1628
  %v1631 = vrot.slane %v1556, 3
  %1632 = vrot.lane.b32.xlu0 %v1631, 96
  %v1633 = vpop.permute.xlu0 %1632
  %v1635 = vrot.slane %v1556, 4
  %v1637 = vrot.slane %v1556, 5
  %1638 = vrot.lane.b32.xlu0 %v1637, 32
  %v1639 = vpop.permute.xlu0 %1638
  %v1641 = vrot.slane %v1556, 6
  %1642 = vrot.lane.b32.xlu0 %v1641, 64
  %v1643 = vpop.permute.xlu0 %1642
  %v1645 = vrot.slane %v1556, 7
  %1646 = vrot.lane.b32.xlu0 %v1645, 96
  %v1647 = vpop.permute.xlu0 %1646
  %v1649 = vsel %vm64, %v1556, %v1625
  %v1650 = vsel %vm1615, %v1649, %v1629
  %v1651 = vsel %vm1617, %v1650, %v1633
  %v1652 = vsel %vm64, %v1635, %v1639
  %v1653 = vsel %vm1615, %v1652, %v1643
  %v1654 = vsel %vm1617, %v1653, %v1647
  %v1657 = vrot.slane %v1651, 7
  %v1658 = vrot.slane %v1654, 7
  %v1661 = vsel %vm659, %v1618, %v1657
  %v1662 = vsel %vm659, %v1621, %v1658
  %v1665 = vrot.slane %v1662, 6
  %v1666 = vsel %vm661, %v1661, %v1665
  %1668 = vst [vmem:[%s11] sm:$0xf] %v1666
  %v1670 = vrot.slane %v1571, 1
  %1671 = vrot.lane.b32.xlu0 %v1670, 32
  %v1672 = vpop.permute.xlu0 %1671
  %v1674 = vrot.slane %v1571, 2
  %1675 = vrot.lane.b32.xlu0 %v1674, 64
  %v1676 = vpop.permute.xlu0 %1675
  %v1678 = vrot.slane %v1571, 3
  %1679 = vrot.lane.b32.xlu0 %v1678, 96
  %v1680 = vpop.permute.xlu0 %1679
  %v1682 = vrot.slane %v1571, 4
  %v1684 = vrot.slane %v1571, 5
  %1685 = vrot.lane.b32.xlu0 %v1684, 32
  %v1686 = vpop.permute.xlu0 %1685
  %v1688 = vrot.slane %v1571, 6
  %1689 = vrot.lane.b32.xlu0 %v1688, 64
  %v1690 = vpop.permute.xlu0 %1689
  %v1692 = vrot.slane %v1571, 7
  %1693 = vrot.lane.b32.xlu0 %v1692, 96
  %v1694 = vpop.permute.xlu0 %1693
  %v1696 = vsel %vm64, %v1571, %v1672
  %v1697 = vsel %vm1615, %v1696, %v1676
  %v1698 = vsel %vm1617, %v1697, %v1680
  %v1699 = vsel %vm64, %v1682, %v1686
  %v1700 = vsel %vm1615, %v1699, %v1690
  %v1701 = vsel %vm1617, %v1700, %v1694
  %v1703 = vrot.slane %v1586, 1
  %1704 = vrot.lane.b32.xlu0 %v1703, 32
  %v1705 = vpop.permute.xlu0 %1704
  %v1707 = vrot.slane %v1586, 2
  %1708 = vrot.lane.b32.xlu0 %v1707, 64
  %v1709 = vpop.permute.xlu0 %1708
  %v1711 = vrot.slane %v1586, 3
  %1712 = vrot.lane.b32.xlu0 %v1711, 96
  %v1713 = vpop.permute.xlu0 %1712
  %v1715 = vrot.slane %v1586, 4
  %v1717 = vrot.slane %v1586, 5
  %1718 = vrot.lane.b32.xlu0 %v1717, 32
  %v1719 = vpop.permute.xlu0 %1718
  %v1721 = vrot.slane %v1586, 6
  %1722 = vrot.lane.b32.xlu0 %v1721, 64
  %v1723 = vpop.permute.xlu0 %1722
  %v1725 = vrot.slane %v1586, 7
  %1726 = vrot.lane.b32.xlu0 %v1725, 96
  %v1727 = vpop.permute.xlu0 %1726
  %v1729 = vsel %vm64, %v1586, %v1705
  %v1730 = vsel %vm1615, %v1729, %v1709
  %v1731 = vsel %vm1617, %v1730, %v1713
  %v1732 = vsel %vm64, %v1715, %v1719
  %v1733 = vsel %vm1615, %v1732, %v1723
  %v1734 = vsel %vm1617, %v1733, %v1727
  %v1737 = vrot.slane %v1731, 7
  %v1738 = vrot.slane %v1734, 7
  %v1741 = vsel %vm659, %v1698, %v1737
  %v1742 = vsel %vm659, %v1701, %v1738
  %v1745 = vrot.slane %v1742, 6
  %v1746 = vsel %vm661, %v1741, %v1745
  %1748 = vst [vmem:[%s12] sm:$0xf] %v1746
  // Predicated region
  $region46: #{_speller_fused.1} parent=0 // pred_check
    _
  $region47: #{_speller_fused.1} parent=0 // pred_check_branch
    %1750 = sbr.rel (0) target = $region49
  $region48: #{_speller_fused.1} parent=0 // pred_region
    _
  $region49: #{_speller_fused.1} parent=0 // pred_fallthru
    _
  // Predicated region
  $region50: #{_speller_fused.1} parent=0 // pred_check
    _
  $region51: #{_speller_fused.1} parent=0 // pred_check_branch
    %1752 = sbr.rel (0) target = $region53
  $region52: #{_speller_fused.1} parent=0 // pred_region
    _
  $region53: #{_speller_fused.1} parent=0 // pred_fallthru
    _
  // Predicated region
  $region54: #{_speller_fused.1} parent=0 // pred_check
    _
  $region55: #{_speller_fused.1} parent=0 // pred_check_branch
    %1754 = sbr.rel (0) target = $region57
  $region56: #{_speller_fused.1} parent=0 // pred_region
    _
  $region57: #{_speller_fused.1} parent=0 // pred_fallthru
    _
  // Predicated region
  $region58: #{_speller_fused.1} parent=0 // pred_check
    _
  $region59: #{_speller_fused.1} parent=0 // pred_check_branch
    %1756 = sbr.rel (0) target = $region61
  $region60: #{_speller_fused.1} parent=0 // pred_region
    _
  $region61: #{_speller_fused.1} parent=0 // pred_fallthru
    _

</llo_original>
